<compile_context>
chip_gen: v5e
topology: v5e:2x2
jax: 0.10.0
libtpu: 0.0.40
codegen_flags: <defaults>
</compile_context>

<pallas_src>
import functools

import numpy as np
import jax
import jax.numpy as jnp
from jax import lax
from jax.experimental import pallas as pl
from jax.experimental.pallas import tpu as pltpu

TANH_SCALE = 1.7159
NUM_CLASSES = 10
K = 5  # kernel size of every conv layer in LeNet-5


def _act(z):
    """ScaledTanh from the PyTorch module: scale * tanh(x) (f32 epilogue)."""
    return TANH_SCALE * jnp.tanh(z)


def _mm(lhs, rhs):
    """bf16 x bf16 MXU matmul with f32 accumulation."""
    return jnp.dot(lhs.astype(jnp.bfloat16), rhs.astype(jnp.bfloat16),
                   preferred_element_type=jnp.float32)


# ----------------------------------------------------------------------------
# The fused per-sample kernel (grid = (batch,))
# ----------------------------------------------------------------------------
def _lenet5_kernel(x_ref, m1_ref, b1_ref, p1c_ref, p1r_ref,
                   m2_ref, b2_ref, p2c_ref, p2r_ref,
                   w3_ref, b3_ref, w4_ref, b4_ref, w5_ref, b5_ref,
                   o_ref):
    # ---- conv1: (1,32,32) -> (28, 28*6), scaled tanh ----------------------
    x = x_ref[0]                                       # (32, 32) f32
    acc_a = _mm(x[0:28, :], m1_ref[0])
    acc_b = _mm(x[1:29, :], m1_ref[1])
    acc_a = acc_a + _mm(x[2:30, :], m1_ref[2])
    acc_b = acc_b + _mm(x[3:31, :], m1_ref[3])
    acc_a = acc_a + _mm(x[4:32, :], m1_ref[4])
    h1 = _act(acc_a + acc_b + b1_ref[...])             # (28, 168): rows i, cols j*6+o

    # ---- maxpool 2x2 -> (14, 14*6) ----------------------------------------
    cm = jnp.maximum(h1[:, :-6], h1[:, 6:])            # pairwise max along width (28, 162)
    u = _mm(cm, p1c_ref[...])                          # keep even spatial columns (28, 84)
    v = jnp.maximum(u[:-1, :], u[1:, :])               # pairwise max along height (27, 84)
    a2 = _mm(p1r_ref[...], v)                          # keep even rows -> (14, 84)

    # ---- conv2: (14, 14*6) -> (10, 10*16), scaled tanh --------------------
    acc_a = _mm(a2[0:10, :], m2_ref[0])
    acc_b = _mm(a2[1:11, :], m2_ref[1])
    acc_a = acc_a + _mm(a2[2:12, :], m2_ref[2])
    acc_b = acc_b + _mm(a2[3:13, :], m2_ref[3])
    acc_a = acc_a + _mm(a2[4:14, :], m2_ref[4])
    h2 = _act(acc_a + acc_b + b2_ref[...])             # (10, 160): rows i, cols j*16+o

    # ---- maxpool 2x2 -> (5, 5*16) ------------------------------------------
    cm = jnp.maximum(h2[:, :-16], h2[:, 16:])          # (10, 144)
    u = _mm(cm, p2c_ref[...])                          # (10, 80)
    v = jnp.maximum(u[:-1, :], u[1:, :])               # (9, 80)
    a3 = _mm(p2r_ref[...], v)                          # (5, 80)

    # ---- conv3: (5, 5*16) -> (1, 120), scaled tanh -------------------------
    acc_a = _mm(a3[0:1, :], w3_ref[0])
    acc_b = _mm(a3[1:2, :], w3_ref[1])
    acc_a = acc_a + _mm(a3[2:3, :], w3_ref[2])
    acc_b = acc_b + _mm(a3[3:4, :], w3_ref[3])
    acc_a = acc_a + _mm(a3[4:5, :], w3_ref[4])
    h3 = _act(acc_a + acc_b + b3_ref[...])             # (1, 120)

    # ---- fc1 (scaled tanh) + fc2 (no activation) ---------------------------
    h4 = _act(_mm(h3, w4_ref[...]) + b4_ref[...])      # (1, 84)
    logits = _mm(h4, w5_ref[...]) + b5_ref[...]        # (1, 10)

    o_ref[...] = logits.reshape((1, 1, NUM_CLASSES)).astype(o_ref.dtype)


# ----------------------------------------------------------------------------
# One-time parameter / constant preparation (outside the hot path)
# ----------------------------------------------------------------------------
def _conv_banded(w, w_out):
    """w: (O, C, K, K) -> (K, (w_out+K-1)*C, w_out*O) banded matrices.

    m[di][(j+dj)*C + c, j*O + o] = w[o, c, di, dj]   (dj folded into the band)
    """
    o, c = int(w.shape[0]), int(w.shape[1])
    w_in = w_out + K - 1
    wn = np.asarray(w, dtype=np.float32)
    m = np.zeros((K, w_in * c, w_out * o), np.float32)
    for di in range(K):
        for dj in range(K):
            blk = wn[:, :, di, dj].T                   # (c, o)
            for j in range(w_out):
                r = (j + dj) * c
                m[di, r:r + c, j * o:(j + 1) * o] = blk
    return jnp.asarray(m, jnp.bfloat16)


def _tiled_bias(b, w_out):
    return jnp.tile(b, w_out).reshape(1, w_out * b.shape[0]).astype(jnp.float32)


def _pool_col_selector(w_spatial, ch):
    """0/1 matrix ((w-1)*ch, (w//2)*ch) selecting even spatial columns."""
    s = np.zeros(((w_spatial - 1) * ch, (w_spatial // 2) * ch), np.float32)
    for q in range(w_spatial // 2):
        for c in range(ch):
            s[2 * q * ch + c, q * ch + c] = 1.0
    return jnp.asarray(s, jnp.bfloat16)


def _pool_row_selector(h_valid):
    """0/1 matrix (h/2, h-1) selecting even rows of the pairwise row-max."""
    s = np.zeros((h_valid // 2, h_valid - 1), np.float32)
    for p in range(h_valid // 2):
        s[p, 2 * p] = 1.0
    return jnp.asarray(s, jnp.bfloat16)


def prepare_lenet5(params):
    """Repack PyTorch-layout parameters for the fused kernel (done once)."""
    bf = jnp.bfloat16
    return {
        "m1": _conv_banded(params["conv1_w"], 28),
        "b1": _tiled_bias(params["conv1_b"], 28),
        "p1c": _pool_col_selector(28, 6),
        "p1r": _pool_row_selector(28),
        "m2": _conv_banded(params["conv2_w"], 10),
        "b2": _tiled_bias(params["conv2_b"], 10),
        "p2c": _pool_col_selector(10, 16),
        "p2r": _pool_row_selector(10),
        "w3": jnp.transpose(params["conv3_w"], (2, 3, 1, 0))
                 .reshape(K, K * 16, 120).astype(bf),
        "b3": params["conv3_b"].reshape(1, 120).astype(jnp.float32),
        "w4": params["fc1_w"].T.astype(bf),
        "b4": params["fc1_b"].reshape(1, 84).astype(jnp.float32),
        "w5": params["fc2_w"].T.astype(bf),
        "b5": params["fc2_b"].reshape(1, NUM_CLASSES).astype(jnp.float32),
    }


def _const_spec(arr):
    nd = arr.ndim
    return pl.BlockSpec(arr.shape, lambda b: (0,) * nd)


# Per-sample cost (MXU flops of the packed formulation, tanh count).
_FLOPS_PER_SAMPLE = 2 * (5 * 28 * 32 * 168 + 28 * 162 * 84 + 14 * 27 * 84
                         + 5 * 10 * 84 * 160 + 10 * 144 * 80 + 5 * 9 * 80
                         + 5 * 80 * 120 + 120 * 84 + 84 * 10)
_TRANS_PER_SAMPLE = 28 * 168 + 10 * 160 + 120 + 84


def lenet5_forward(prep, x):
    """x: (B, 1, 32, 32) float32 NCHW -> (B, 10) logits.  One pallas_call."""
    batch = x.shape[0]
    x3d = x.reshape(batch, 32, 32)                      # one (32,32) slab per sample

    args = (x3d, prep["m1"], prep["b1"], prep["p1c"], prep["p1r"],
            prep["m2"], prep["b2"], prep["p2c"], prep["p2r"],
            prep["w3"], prep["b3"], prep["w4"], prep["b4"],
            prep["w5"], prep["b5"])

    in_specs = [pl.BlockSpec((1, 32, 32), lambda b: (b, 0, 0))]
    in_specs += [_const_spec(a) for a in args[1:]]

    bytes_accessed = sum(int(np.prod(a.shape)) * a.dtype.itemsize for a in args)
    bytes_accessed += batch * NUM_CLASSES * 4

    out = pl.pallas_call(
        _lenet5_kernel,
        grid=(batch,),
        out_shape=jax.ShapeDtypeStruct((batch, 1, NUM_CLASSES), jnp.float32),
        in_specs=in_specs,
        out_specs=pl.BlockSpec((1, 1, NUM_CLASSES), lambda b: (b, 0, 0)),
        compiler_params=pltpu.CompilerParams(
            dimension_semantics=("parallel",)),
        cost_estimate=pl.CostEstimate(
            flops=_FLOPS_PER_SAMPLE * batch,
            transcendentals=_TRANS_PER_SAMPLE * batch,
            bytes_accessed=int(bytes_accessed)),
    )(*args)
    return out.reshape(batch, NUM_CLASSES)


# ----------------------------------------------------------------------------
# Deterministic synthetic parameters + plain-JAX reference for sanity checking
# ----------------------------------------------------------------------------
def init_lenet5_params(key):
    ks = jax.random.split(key, 10)
    s = 0.1
    return {
        "conv1_w": jax.random.normal(ks[0], (6, 1, 5, 5), jnp.float32) * s,
        "conv1_b": jax.random.normal(ks[1], (6,), jnp.float32) * s,
        "conv2_w": jax.random.normal(ks[2], (16, 6, 5, 5), jnp.float32) * s,
        "conv2_b": jax.random.normal(ks[3], (16,), jnp.float32) * s,
        "conv3_w": jax.random.normal(ks[4], (120, 16, 5, 5), jnp.float32) * s,
        "conv3_b": jax.random.normal(ks[5], (120,), jnp.float32) * s,
        "fc1_w": jax.random.normal(ks[6], (84, 120), jnp.float32) * s,
        "fc1_b": jax.random.normal(ks[7], (84,), jnp.float32) * s,
        "fc2_w": jax.random.normal(ks[8], (NUM_CLASSES, 84), jnp.float32) * s,
        "fc2_b": jax.random.normal(ks[9], (NUM_CLASSES,), jnp.float32) * s,
    }


def _reference_forward(params, x):
    hi = lax.Precision.HIGHEST

    def conv(z, w, b):
        out = lax.conv_general_dilated(
            z, w, window_strides=(1, 1), padding="VALID",
            dimension_numbers=("NCHW", "OIHW", "NCHW"), precision=hi)
        return out + b.reshape(1, -1, 1, 1)

    def pool(z):
        n, c, h, w = z.shape
        return z.reshape(n, c, h // 2, 2, w // 2, 2).max(axis=(3, 5))

    z = _act(conv(x, params["conv1_w"], params["conv1_b"]))
    z = pool(z)
    z = _act(conv(z, params["conv2_w"], params["conv2_b"]))
    z = pool(z)
    z = _act(conv(z, params["conv3_w"], params["conv3_b"]))
    z = z.reshape(z.shape[0], -1)
    z = _act(jnp.dot(z, params["fc1_w"].T, precision=hi) + params["fc1_b"])
    return jnp.dot(z, params["fc2_w"].T, precision=hi) + params["fc2_b"]


if __name__ == "__main__":
    key = jax.random.PRNGKey(0)
    pkey, xkey = jax.random.split(key)
    params = init_lenet5_params(pkey)

    batch = 2                          # LeNet-5 needs 32x32 spatial input
    x = jax.random.normal(xkey, (batch, 1, 32, 32), jnp.float32)

    prep = prepare_lenet5(params)                 # one-time weight repacking
    fwd = jax.jit(lenet5_forward)
    logits = fwd(prep, x)
    jax.block_until_ready(logits)

    assert logits.shape == (batch, NUM_CLASSES), logits.shape
    assert logits.dtype == jnp.float32

    # Numerical sanity check against an exact-f32 rendering of the PyTorch
    # model.  Matmul inputs in the kernel are bf16 (f32 accumulation), so the
    # error budget is ~1e-2 typical with a 4e-2 bound; the f32-only path was
    # ~1e-5.
    ref = _reference_forward(params, x)
    err = float(jnp.max(jnp.abs(logits - ref)))
    assert err < 4e-2, f"kernel/reference mismatch: max abs err = {err}"

    print("KERNEL_OK")
</pallas_src>

<mosaic_0001>
module attributes {stable_mosaic.version = 11 : i64} {
  func.func @_lenet5_kernel(%arg0: i32, %arg1: memref<1x32x32xf32, #tpu.memory_space<vmem>>, %arg2: memref<5x32x168xbf16, #tpu.memory_space<vmem>>, %arg3: memref<1x168xf32, #tpu.memory_space<vmem>>, %arg4: memref<162x84xbf16, #tpu.memory_space<vmem>>, %arg5: memref<14x27xbf16, #tpu.memory_space<vmem>>, %arg6: memref<5x84x160xbf16, #tpu.memory_space<vmem>>, %arg7: memref<1x160xf32, #tpu.memory_space<vmem>>, %arg8: memref<144x80xbf16, #tpu.memory_space<vmem>>, %arg9: memref<5x9xbf16, #tpu.memory_space<vmem>>, %arg10: memref<5x80x120xbf16, #tpu.memory_space<vmem>>, %arg11: memref<1x120xf32, #tpu.memory_space<vmem>>, %arg12: memref<120x84xbf16, #tpu.memory_space<vmem>>, %arg13: memref<1x84xf32, #tpu.memory_space<vmem>>, %arg14: memref<84x10xbf16, #tpu.memory_space<vmem>>, %arg15: memref<1x10xf32, #tpu.memory_space<vmem>>, %arg16: memref<1x1x10xf32, #tpu.memory_space<vmem>>) attributes {dimension_semantics = [#tpu.dimension_semantics<parallel>], iteration_bounds = array<i64: 2>, scalar_prefetch = 0 : i64, scratch_operands = 0 : i64, tpu.core_type = #tpu.core_type<tc>, window_params = [{transform_indices = @transform_0, window_bounds = array<i64: 1, 32, 32>}, {pipeline_mode = #tpu.pipeline_mode<synchronous>, transform_indices = @transform_1, window_bounds = array<i64: 5, 32, 168>}, {pipeline_mode = #tpu.pipeline_mode<synchronous>, transform_indices = @transform_2, window_bounds = array<i64: 1, 168>}, {pipeline_mode = #tpu.pipeline_mode<synchronous>, transform_indices = @transform_3, window_bounds = array<i64: 162, 84>}, {pipeline_mode = #tpu.pipeline_mode<synchronous>, transform_indices = @transform_4, window_bounds = array<i64: 14, 27>}, {pipeline_mode = #tpu.pipeline_mode<synchronous>, transform_indices = @transform_5, window_bounds = array<i64: 5, 84, 160>}, {pipeline_mode = #tpu.pipeline_mode<synchronous>, transform_indices = @transform_6, window_bounds = array<i64: 1, 160>}, {pipeline_mode = #tpu.pipeline_mode<synchronous>, transform_indices = @transform_7, window_bounds = array<i64: 144, 80>}, {pipeline_mode = #tpu.pipeline_mode<synchronous>, transform_indices = @transform_8, window_bounds = array<i64: 5, 9>}, {pipeline_mode = #tpu.pipeline_mode<synchronous>, transform_indices = @transform_9, window_bounds = array<i64: 5, 80, 120>}, {pipeline_mode = #tpu.pipeline_mode<synchronous>, transform_indices = @transform_10, window_bounds = array<i64: 1, 120>}, {pipeline_mode = #tpu.pipeline_mode<synchronous>, transform_indices = @transform_11, window_bounds = array<i64: 120, 84>}, {pipeline_mode = #tpu.pipeline_mode<synchronous>, transform_indices = @transform_12, window_bounds = array<i64: 1, 84>}, {pipeline_mode = #tpu.pipeline_mode<synchronous>, transform_indices = @transform_13, window_bounds = array<i64: 84, 10>}, {pipeline_mode = #tpu.pipeline_mode<synchronous>, transform_indices = @transform_14, window_bounds = array<i64: 1, 10>}, {transform_indices = @transform_15, window_bounds = array<i64: 1, 1, 10>}]} {
    %c0 = arith.constant 0 : index
    %c0_0 = arith.constant 0 : index
    %c0_1 = arith.constant 0 : index
    %0 = vector.load %arg1[%c0, %c0_0, %c0_1] : memref<1x32x32xf32, #tpu.memory_space<vmem>>, vector<1x32x32xf32>
    %1 = vector.shape_cast %0 : vector<1x32x32xf32> to vector<32x32xf32>
    %2 = vector.extract_strided_slice %1 {offsets = [0, 0], sizes = [28, 32], strides = [1, 1]} : vector<32x32xf32> to vector<28x32xf32>
    %c0_2 = arith.constant 0 : index
    %c0_3 = arith.constant 0 : index
    %c0_4 = arith.constant 0 : index
    %3 = vector.load %arg2[%c0_2, %c0_3, %c0_4] : memref<5x32x168xbf16, #tpu.memory_space<vmem>>, vector<1x32x168xbf16>
    %4 = vector.shape_cast %3 : vector<1x32x168xbf16> to vector<32x168xbf16>
    %5 = arith.truncf %2 : vector<28x32xf32> to vector<28x32xbf16>
    %cst = arith.constant dense<0.000000e+00> : vector<28x168xf32>
    %6 = tpu.matmul %5, %4, %cst {dimension_numbers = #tpu.dot_dimension_numbers<[1], [0], [0], [1], [0, 0, 1, 1], [], []>} : vector<28x32xbf16>, vector<32x168xbf16>, vector<28x168xf32> -> vector<28x168xf32>
    %7 = vector.extract_strided_slice %1 {offsets = [1, 0], sizes = [28, 32], strides = [1, 1]} : vector<32x32xf32> to vector<28x32xf32>
    %c1 = arith.constant 1 : index
    %c0_5 = arith.constant 0 : index
    %c0_6 = arith.constant 0 : index
    %8 = vector.load %arg2[%c1, %c0_5, %c0_6] : memref<5x32x168xbf16, #tpu.memory_space<vmem>>, vector<1x32x168xbf16>
    %9 = vector.shape_cast %8 : vector<1x32x168xbf16> to vector<32x168xbf16>
    %10 = arith.truncf %7 : vector<28x32xf32> to vector<28x32xbf16>
    %cst_7 = arith.constant dense<0.000000e+00> : vector<28x168xf32>
    %11 = tpu.matmul %10, %9, %cst_7 {dimension_numbers = #tpu.dot_dimension_numbers<[1], [0], [0], [1], [0, 0, 1, 1], [], []>} : vector<28x32xbf16>, vector<32x168xbf16>, vector<28x168xf32> -> vector<28x168xf32>
    %12 = vector.extract_strided_slice %1 {offsets = [2, 0], sizes = [28, 32], strides = [1, 1]} : vector<32x32xf32> to vector<28x32xf32>
    %c2 = arith.constant 2 : index
    %c0_8 = arith.constant 0 : index
    %c0_9 = arith.constant 0 : index
    %13 = vector.load %arg2[%c2, %c0_8, %c0_9] : memref<5x32x168xbf16, #tpu.memory_space<vmem>>, vector<1x32x168xbf16>
    %14 = vector.shape_cast %13 : vector<1x32x168xbf16> to vector<32x168xbf16>
    %15 = arith.truncf %12 : vector<28x32xf32> to vector<28x32xbf16>
    %cst_10 = arith.constant dense<0.000000e+00> : vector<28x168xf32>
    %16 = tpu.matmul %15, %14, %cst_10 {dimension_numbers = #tpu.dot_dimension_numbers<[1], [0], [0], [1], [0, 0, 1, 1], [], []>} : vector<28x32xbf16>, vector<32x168xbf16>, vector<28x168xf32> -> vector<28x168xf32>
    %17 = arith.addf %6, %16 : vector<28x168xf32>
    %18 = vector.extract_strided_slice %1 {offsets = [3, 0], sizes = [28, 32], strides = [1, 1]} : vector<32x32xf32> to vector<28x32xf32>
    %c3 = arith.constant 3 : index
    %c0_11 = arith.constant 0 : index
    %c0_12 = arith.constant 0 : index
    %19 = vector.load %arg2[%c3, %c0_11, %c0_12] : memref<5x32x168xbf16, #tpu.memory_space<vmem>>, vector<1x32x168xbf16>
    %20 = vector.shape_cast %19 : vector<1x32x168xbf16> to vector<32x168xbf16>
    %21 = arith.truncf %18 : vector<28x32xf32> to vector<28x32xbf16>
    %cst_13 = arith.constant dense<0.000000e+00> : vector<28x168xf32>
    %22 = tpu.matmul %21, %20, %cst_13 {dimension_numbers = #tpu.dot_dimension_numbers<[1], [0], [0], [1], [0, 0, 1, 1], [], []>} : vector<28x32xbf16>, vector<32x168xbf16>, vector<28x168xf32> -> vector<28x168xf32>
    %23 = arith.addf %11, %22 : vector<28x168xf32>
    %24 = vector.extract_strided_slice %1 {offsets = [4, 0], sizes = [28, 32], strides = [1, 1]} : vector<32x32xf32> to vector<28x32xf32>
    %c4 = arith.constant 4 : index
    %c0_14 = arith.constant 0 : index
    %c0_15 = arith.constant 0 : index
    %25 = vector.load %arg2[%c4, %c0_14, %c0_15] : memref<5x32x168xbf16, #tpu.memory_space<vmem>>, vector<1x32x168xbf16>
    %26 = vector.shape_cast %25 : vector<1x32x168xbf16> to vector<32x168xbf16>
    %27 = arith.truncf %24 : vector<28x32xf32> to vector<28x32xbf16>
    %cst_16 = arith.constant dense<0.000000e+00> : vector<28x168xf32>
    %28 = tpu.matmul %27, %26, %cst_16 {dimension_numbers = #tpu.dot_dimension_numbers<[1], [0], [0], [1], [0, 0, 1, 1], [], []>} : vector<28x32xbf16>, vector<32x168xbf16>, vector<28x168xf32> -> vector<28x168xf32>
    %29 = arith.addf %17, %28 : vector<28x168xf32>
    %30 = arith.addf %29, %23 : vector<28x168xf32>
    %c0_17 = arith.constant 0 : index
    %c0_18 = arith.constant 0 : index
    %31 = vector.load %arg3[%c0_17, %c0_18] : memref<1x168xf32, #tpu.memory_space<vmem>>, vector<1x168xf32>
    %32 = vector.broadcast %31 : vector<1x168xf32> to vector<28x168xf32>
    %33 = arith.addf %30, %32 : vector<28x168xf32>
    %34 = math.tanh %33 : vector<28x168xf32>
    %cst_19 = arith.constant 1.715900e+00 : f32
    %35 = vector.broadcast %cst_19 : f32 to vector<28x168xf32>
    %36 = arith.mulf %35, %34 : vector<28x168xf32>
    %37 = vector.extract_strided_slice %36 {offsets = [0, 0], sizes = [28, 162], strides = [1, 1]} : vector<28x168xf32> to vector<28x162xf32>
    %38 = vector.extract_strided_slice %36 {offsets = [0, 6], sizes = [28, 162], strides = [1, 1]} : vector<28x168xf32> to vector<28x162xf32>
    %39 = arith.maximumf %37, %38 : vector<28x162xf32>
    %c0_20 = arith.constant 0 : index
    %c0_21 = arith.constant 0 : index
    %40 = vector.load %arg4[%c0_20, %c0_21] : memref<162x84xbf16, #tpu.memory_space<vmem>>, vector<162x84xbf16>
    %41 = arith.truncf %39 : vector<28x162xf32> to vector<28x162xbf16>
    %cst_22 = arith.constant dense<0.000000e+00> : vector<28x84xf32>
    %42 = tpu.matmul %41, %40, %cst_22 {dimension_numbers = #tpu.dot_dimension_numbers<[1], [0], [0], [1], [0, 0, 1, 1], [], []>} : vector<28x162xbf16>, vector<162x84xbf16>, vector<28x84xf32> -> vector<28x84xf32>
    %43 = vector.extract_strided_slice %42 {offsets = [0, 0], sizes = [27, 84], strides = [1, 1]} : vector<28x84xf32> to vector<27x84xf32>
    %44 = vector.extract_strided_slice %42 {offsets = [1, 0], sizes = [27, 84], strides = [1, 1]} : vector<28x84xf32> to vector<27x84xf32>
    %45 = arith.maximumf %43, %44 : vector<27x84xf32>
    %c0_23 = arith.constant 0 : index
    %c0_24 = arith.constant 0 : index
    %46 = vector.load %arg5[%c0_23, %c0_24] : memref<14x27xbf16, #tpu.memory_space<vmem>>, vector<14x27xbf16>
    %47 = arith.truncf %45 : vector<27x84xf32> to vector<27x84xbf16>
    %cst_25 = arith.constant dense<0.000000e+00> : vector<14x84xf32>
    %48 = tpu.matmul %46, %47, %cst_25 {dimension_numbers = #tpu.dot_dimension_numbers<[1], [0], [0], [1], [0, 0, 1, 1], [], []>} : vector<14x27xbf16>, vector<27x84xbf16>, vector<14x84xf32> -> vector<14x84xf32>
    %49 = vector.extract_strided_slice %48 {offsets = [0, 0], sizes = [10, 84], strides = [1, 1]} : vector<14x84xf32> to vector<10x84xf32>
    %c0_26 = arith.constant 0 : index
    %c0_27 = arith.constant 0 : index
    %c0_28 = arith.constant 0 : index
    %50 = vector.load %arg6[%c0_26, %c0_27, %c0_28] : memref<5x84x160xbf16, #tpu.memory_space<vmem>>, vector<1x84x160xbf16>
    %51 = vector.shape_cast %50 : vector<1x84x160xbf16> to vector<84x160xbf16>
    %52 = arith.truncf %49 : vector<10x84xf32> to vector<10x84xbf16>
    %cst_29 = arith.constant dense<0.000000e+00> : vector<10x160xf32>
    %53 = tpu.matmul %52, %51, %cst_29 {dimension_numbers = #tpu.dot_dimension_numbers<[1], [0], [0], [1], [0, 0, 1, 1], [], []>} : vector<10x84xbf16>, vector<84x160xbf16>, vector<10x160xf32> -> vector<10x160xf32>
    %54 = vector.extract_strided_slice %48 {offsets = [1, 0], sizes = [10, 84], strides = [1, 1]} : vector<14x84xf32> to vector<10x84xf32>
    %c1_30 = arith.constant 1 : index
    %c0_31 = arith.constant 0 : index
    %c0_32 = arith.constant 0 : index
    %55 = vector.load %arg6[%c1_30, %c0_31, %c0_32] : memref<5x84x160xbf16, #tpu.memory_space<vmem>>, vector<1x84x160xbf16>
    %56 = vector.shape_cast %55 : vector<1x84x160xbf16> to vector<84x160xbf16>
    %57 = arith.truncf %54 : vector<10x84xf32> to vector<10x84xbf16>
    %cst_33 = arith.constant dense<0.000000e+00> : vector<10x160xf32>
    %58 = tpu.matmul %57, %56, %cst_33 {dimension_numbers = #tpu.dot_dimension_numbers<[1], [0], [0], [1], [0, 0, 1, 1], [], []>} : vector<10x84xbf16>, vector<84x160xbf16>, vector<10x160xf32> -> vector<10x160xf32>
    %59 = vector.extract_strided_slice %48 {offsets = [2, 0], sizes = [10, 84], strides = [1, 1]} : vector<14x84xf32> to vector<10x84xf32>
    %c2_34 = arith.constant 2 : index
    %c0_35 = arith.constant 0 : index
    %c0_36 = arith.constant 0 : index
    %60 = vector.load %arg6[%c2_34, %c0_35, %c0_36] : memref<5x84x160xbf16, #tpu.memory_space<vmem>>, vector<1x84x160xbf16>
    %61 = vector.shape_cast %60 : vector<1x84x160xbf16> to vector<84x160xbf16>
    %62 = arith.truncf %59 : vector<10x84xf32> to vector<10x84xbf16>
    %cst_37 = arith.constant dense<0.000000e+00> : vector<10x160xf32>
    %63 = tpu.matmul %62, %61, %cst_37 {dimension_numbers = #tpu.dot_dimension_numbers<[1], [0], [0], [1], [0, 0, 1, 1], [], []>} : vector<10x84xbf16>, vector<84x160xbf16>, vector<10x160xf32> -> vector<10x160xf32>
    %64 = arith.addf %53, %63 : vector<10x160xf32>
    %65 = vector.extract_strided_slice %48 {offsets = [3, 0], sizes = [10, 84], strides = [1, 1]} : vector<14x84xf32> to vector<10x84xf32>
    %c3_38 = arith.constant 3 : index
    %c0_39 = arith.constant 0 : index
    %c0_40 = arith.constant 0 : index
    %66 = vector.load %arg6[%c3_38, %c0_39, %c0_40] : memref<5x84x160xbf16, #tpu.memory_space<vmem>>, vector<1x84x160xbf16>
    %67 = vector.shape_cast %66 : vector<1x84x160xbf16> to vector<84x160xbf16>
    %68 = arith.truncf %65 : vector<10x84xf32> to vector<10x84xbf16>
    %cst_41 = arith.constant dense<0.000000e+00> : vector<10x160xf32>
    %69 = tpu.matmul %68, %67, %cst_41 {dimension_numbers = #tpu.dot_dimension_numbers<[1], [0], [0], [1], [0, 0, 1, 1], [], []>} : vector<10x84xbf16>, vector<84x160xbf16>, vector<10x160xf32> -> vector<10x160xf32>
    %70 = arith.addf %58, %69 : vector<10x160xf32>
    %71 = vector.extract_strided_slice %48 {offsets = [4, 0], sizes = [10, 84], strides = [1, 1]} : vector<14x84xf32> to vector<10x84xf32>
    %c4_42 = arith.constant 4 : index
    %c0_43 = arith.constant 0 : index
    %c0_44 = arith.constant 0 : index
    %72 = vector.load %arg6[%c4_42, %c0_43, %c0_44] : memref<5x84x160xbf16, #tpu.memory_space<vmem>>, vector<1x84x160xbf16>
    %73 = vector.shape_cast %72 : vector<1x84x160xbf16> to vector<84x160xbf16>
    %74 = arith.truncf %71 : vector<10x84xf32> to vector<10x84xbf16>
    %cst_45 = arith.constant dense<0.000000e+00> : vector<10x160xf32>
    %75 = tpu.matmul %74, %73, %cst_45 {dimension_numbers = #tpu.dot_dimension_numbers<[1], [0], [0], [1], [0, 0, 1, 1], [], []>} : vector<10x84xbf16>, vector<84x160xbf16>, vector<10x160xf32> -> vector<10x160xf32>
    %76 = arith.addf %64, %75 : vector<10x160xf32>
    %77 = arith.addf %76, %70 : vector<10x160xf32>
    %c0_46 = arith.constant 0 : index
    %c0_47 = arith.constant 0 : index
    %78 = vector.load %arg7[%c0_46, %c0_47] : memref<1x160xf32, #tpu.memory_space<vmem>>, vector<1x160xf32>
    %79 = vector.broadcast %78 : vector<1x160xf32> to vector<10x160xf32>
    %80 = arith.addf %77, %79 : vector<10x160xf32>
    %81 = math.tanh %80 : vector<10x160xf32>
    %cst_48 = arith.constant 1.715900e+00 : f32
    %82 = vector.broadcast %cst_48 : f32 to vector<10x160xf32>
    %83 = arith.mulf %82, %81 : vector<10x160xf32>
    %84 = vector.extract_strided_slice %83 {offsets = [0, 0], sizes = [10, 144], strides = [1, 1]} : vector<10x160xf32> to vector<10x144xf32>
    %85 = vector.extract_strided_slice %83 {offsets = [0, 16], sizes = [10, 144], strides = [1, 1]} : vector<10x160xf32> to vector<10x144xf32>
    %86 = arith.maximumf %84, %85 : vector<10x144xf32>
    %c0_49 = arith.constant 0 : index
    %c0_50 = arith.constant 0 : index
    %87 = vector.load %arg8[%c0_49, %c0_50] : memref<144x80xbf16, #tpu.memory_space<vmem>>, vector<144x80xbf16>
    %88 = arith.truncf %86 : vector<10x144xf32> to vector<10x144xbf16>
    %cst_51 = arith.constant dense<0.000000e+00> : vector<10x80xf32>
    %89 = tpu.matmul %88, %87, %cst_51 {dimension_numbers = #tpu.dot_dimension_numbers<[1], [0], [0], [1], [0, 0, 1, 1], [], []>} : vector<10x144xbf16>, vector<144x80xbf16>, vector<10x80xf32> -> vector<10x80xf32>
    %90 = vector.extract_strided_slice %89 {offsets = [0, 0], sizes = [9, 80], strides = [1, 1]} : vector<10x80xf32> to vector<9x80xf32>
    %91 = vector.extract_strided_slice %89 {offsets = [1, 0], sizes = [9, 80], strides = [1, 1]} : vector<10x80xf32> to vector<9x80xf32>
    %92 = arith.maximumf %90, %91 : vector<9x80xf32>
    %c0_52 = arith.constant 0 : index
    %c0_53 = arith.constant 0 : index
    %93 = vector.load %arg9[%c0_52, %c0_53] : memref<5x9xbf16, #tpu.memory_space<vmem>>, vector<5x9xbf16>
    %94 = arith.truncf %92 : vector<9x80xf32> to vector<9x80xbf16>
    %cst_54 = arith.constant dense<0.000000e+00> : vector<5x80xf32>
    %95 = tpu.matmul %93, %94, %cst_54 {dimension_numbers = #tpu.dot_dimension_numbers<[1], [0], [0], [1], [0, 0, 1, 1], [], []>} : vector<5x9xbf16>, vector<9x80xbf16>, vector<5x80xf32> -> vector<5x80xf32>
    %96 = vector.extract_strided_slice %95 {offsets = [0, 0], sizes = [1, 80], strides = [1, 1]} : vector<5x80xf32> to vector<1x80xf32>
    %c0_55 = arith.constant 0 : index
    %c0_56 = arith.constant 0 : index
    %c0_57 = arith.constant 0 : index
    %97 = vector.load %arg10[%c0_55, %c0_56, %c0_57] : memref<5x80x120xbf16, #tpu.memory_space<vmem>>, vector<1x80x120xbf16>
    %98 = vector.shape_cast %97 : vector<1x80x120xbf16> to vector<80x120xbf16>
    %99 = arith.truncf %96 : vector<1x80xf32> to vector<1x80xbf16>
    %cst_58 = arith.constant dense<0.000000e+00> : vector<1x120xf32>
    %100 = tpu.matmul %99, %98, %cst_58 {dimension_numbers = #tpu.dot_dimension_numbers<[1], [0], [0], [1], [0, 0, 1, 1], [], []>} : vector<1x80xbf16>, vector<80x120xbf16>, vector<1x120xf32> -> vector<1x120xf32>
    %101 = vector.extract_strided_slice %95 {offsets = [1, 0], sizes = [1, 80], strides = [1, 1]} : vector<5x80xf32> to vector<1x80xf32>
    %c1_59 = arith.constant 1 : index
    %c0_60 = arith.constant 0 : index
    %c0_61 = arith.constant 0 : index
    %102 = vector.load %arg10[%c1_59, %c0_60, %c0_61] : memref<5x80x120xbf16, #tpu.memory_space<vmem>>, vector<1x80x120xbf16>
    %103 = vector.shape_cast %102 : vector<1x80x120xbf16> to vector<80x120xbf16>
    %104 = arith.truncf %101 : vector<1x80xf32> to vector<1x80xbf16>
    %cst_62 = arith.constant dense<0.000000e+00> : vector<1x120xf32>
    %105 = tpu.matmul %104, %103, %cst_62 {dimension_numbers = #tpu.dot_dimension_numbers<[1], [0], [0], [1], [0, 0, 1, 1], [], []>} : vector<1x80xbf16>, vector<80x120xbf16>, vector<1x120xf32> -> vector<1x120xf32>
    %106 = vector.extract_strided_slice %95 {offsets = [2, 0], sizes = [1, 80], strides = [1, 1]} : vector<5x80xf32> to vector<1x80xf32>
    %c2_63 = arith.constant 2 : index
    %c0_64 = arith.constant 0 : index
    %c0_65 = arith.constant 0 : index
    %107 = vector.load %arg10[%c2_63, %c0_64, %c0_65] : memref<5x80x120xbf16, #tpu.memory_space<vmem>>, vector<1x80x120xbf16>
    %108 = vector.shape_cast %107 : vector<1x80x120xbf16> to vector<80x120xbf16>
    %109 = arith.truncf %106 : vector<1x80xf32> to vector<1x80xbf16>
    %cst_66 = arith.constant dense<0.000000e+00> : vector<1x120xf32>
    %110 = tpu.matmul %109, %108, %cst_66 {dimension_numbers = #tpu.dot_dimension_numbers<[1], [0], [0], [1], [0, 0, 1, 1], [], []>} : vector<1x80xbf16>, vector<80x120xbf16>, vector<1x120xf32> -> vector<1x120xf32>
    %111 = arith.addf %100, %110 : vector<1x120xf32>
    %112 = vector.extract_strided_slice %95 {offsets = [3, 0], sizes = [1, 80], strides = [1, 1]} : vector<5x80xf32> to vector<1x80xf32>
    %c3_67 = arith.constant 3 : index
    %c0_68 = arith.constant 0 : index
    %c0_69 = arith.constant 0 : index
    %113 = vector.load %arg10[%c3_67, %c0_68, %c0_69] : memref<5x80x120xbf16, #tpu.memory_space<vmem>>, vector<1x80x120xbf16>
    %114 = vector.shape_cast %113 : vector<1x80x120xbf16> to vector<80x120xbf16>
    %115 = arith.truncf %112 : vector<1x80xf32> to vector<1x80xbf16>
    %cst_70 = arith.constant dense<0.000000e+00> : vector<1x120xf32>
    %116 = tpu.matmul %115, %114, %cst_70 {dimension_numbers = #tpu.dot_dimension_numbers<[1], [0], [0], [1], [0, 0, 1, 1], [], []>} : vector<1x80xbf16>, vector<80x120xbf16>, vector<1x120xf32> -> vector<1x120xf32>
    %117 = arith.addf %105, %116 : vector<1x120xf32>
    %118 = vector.extract_strided_slice %95 {offsets = [4, 0], sizes = [1, 80], strides = [1, 1]} : vector<5x80xf32> to vector<1x80xf32>
    %c4_71 = arith.constant 4 : index
    %c0_72 = arith.constant 0 : index
    %c0_73 = arith.constant 0 : index
    %119 = vector.load %arg10[%c4_71, %c0_72, %c0_73] : memref<5x80x120xbf16, #tpu.memory_space<vmem>>, vector<1x80x120xbf16>
    %120 = vector.shape_cast %119 : vector<1x80x120xbf16> to vector<80x120xbf16>
    %121 = arith.truncf %118 : vector<1x80xf32> to vector<1x80xbf16>
    %cst_74 = arith.constant dense<0.000000e+00> : vector<1x120xf32>
    %122 = tpu.matmul %121, %120, %cst_74 {dimension_numbers = #tpu.dot_dimension_numbers<[1], [0], [0], [1], [0, 0, 1, 1], [], []>} : vector<1x80xbf16>, vector<80x120xbf16>, vector<1x120xf32> -> vector<1x120xf32>
    %123 = arith.addf %111, %122 : vector<1x120xf32>
    %124 = arith.addf %123, %117 : vector<1x120xf32>
    %c0_75 = arith.constant 0 : index
    %c0_76 = arith.constant 0 : index
    %125 = vector.load %arg11[%c0_75, %c0_76] : memref<1x120xf32, #tpu.memory_space<vmem>>, vector<1x120xf32>
    %126 = arith.addf %124, %125 : vector<1x120xf32>
    %127 = math.tanh %126 : vector<1x120xf32>
    %cst_77 = arith.constant 1.715900e+00 : f32
    %128 = vector.broadcast %cst_77 : f32 to vector<1x120xf32>
    %129 = arith.mulf %128, %127 : vector<1x120xf32>
    %c0_78 = arith.constant 0 : index
    %c0_79 = arith.constant 0 : index
    %130 = vector.load %arg12[%c0_78, %c0_79] : memref<120x84xbf16, #tpu.memory_space<vmem>>, vector<120x84xbf16>
    %131 = arith.truncf %129 : vector<1x120xf32> to vector<1x120xbf16>
    %cst_80 = arith.constant dense<0.000000e+00> : vector<1x84xf32>
    %132 = tpu.matmul %131, %130, %cst_80 {dimension_numbers = #tpu.dot_dimension_numbers<[1], [0], [0], [1], [0, 0, 1, 1], [], []>} : vector<1x120xbf16>, vector<120x84xbf16>, vector<1x84xf32> -> vector<1x84xf32>
    %c0_81 = arith.constant 0 : index
    %c0_82 = arith.constant 0 : index
    %133 = vector.load %arg13[%c0_81, %c0_82] : memref<1x84xf32, #tpu.memory_space<vmem>>, vector<1x84xf32>
    %134 = arith.addf %132, %133 : vector<1x84xf32>
    %135 = math.tanh %134 : vector<1x84xf32>
    %cst_83 = arith.constant 1.715900e+00 : f32
    %136 = vector.broadcast %cst_83 : f32 to vector<1x84xf32>
    %137 = arith.mulf %136, %135 : vector<1x84xf32>
    %c0_84 = arith.constant 0 : index
    %c0_85 = arith.constant 0 : index
    %138 = vector.load %arg14[%c0_84, %c0_85] : memref<84x10xbf16, #tpu.memory_space<vmem>>, vector<84x10xbf16>
    %139 = arith.truncf %137 : vector<1x84xf32> to vector<1x84xbf16>
    %cst_86 = arith.constant dense<0.000000e+00> : vector<1x10xf32>
    %140 = tpu.matmul %139, %138, %cst_86 {dimension_numbers = #tpu.dot_dimension_numbers<[1], [0], [0], [1], [0, 0, 1, 1], [], []>} : vector<1x84xbf16>, vector<84x10xbf16>, vector<1x10xf32> -> vector<1x10xf32>
    %c0_87 = arith.constant 0 : index
    %c0_88 = arith.constant 0 : index
    %141 = vector.load %arg15[%c0_87, %c0_88] : memref<1x10xf32, #tpu.memory_space<vmem>>, vector<1x10xf32>
    %142 = arith.addf %140, %141 : vector<1x10xf32>
    %143 = vector.shape_cast %142 : vector<1x10xf32> to vector<1x1x10xf32>
    %c0_89 = arith.constant 0 : index
    %c0_90 = arith.constant 0 : index
    %c0_91 = arith.constant 0 : index
    %144 = vector.load %arg16[%c0_89, %c0_90, %c0_91] : memref<1x1x10xf32, #tpu.memory_space<vmem>>, vector<1x1x10xf32>
    tpu.vector_store %arg16[%c0_89, %c0_90, %c0_91], %143 {strides = array<i32>} : memref<1x1x10xf32, #tpu.memory_space<vmem>>, vector<1x1x10xf32>,
    return
  }
  func.func @transform_0(%arg0: i32) -> (i32, i32, i32) {
    %c0_i32 = arith.constant 0 : i32
    %c0_i32_0 = arith.constant 0 : i32
    %c0_i32_1 = arith.constant 0 : i32
    return %arg0, %c0_i32, %c0_i32_0 : i32, i32, i32
  }
  func.func @transform_1(%arg0: i32) -> (i32, i32, i32) {
    %c0_i32 = arith.constant 0 : i32
    %c0_i32_0 = arith.constant 0 : i32
    %c0_i32_1 = arith.constant 0 : i32
    %c0_i32_2 = arith.constant 0 : i32
    return %c0_i32, %c0_i32_0, %c0_i32_1 : i32, i32, i32
  }
  func.func @transform_2(%arg0: i32) -> (i32, i32) {
    %c0_i32 = arith.constant 0 : i32
    %c0_i32_0 = arith.constant 0 : i32
    %c0_i32_1 = arith.constant 0 : i32
    return %c0_i32, %c0_i32_0 : i32, i32
  }
  func.func @transform_3(%arg0: i32) -> (i32, i32) {
    %c0_i32 = arith.constant 0 : i32
    %c0_i32_0 = arith.constant 0 : i32
    %c0_i32_1 = arith.constant 0 : i32
    return %c0_i32, %c0_i32_0 : i32, i32
  }
  func.func @transform_4(%arg0: i32) -> (i32, i32) {
    %c0_i32 = arith.constant 0 : i32
    %c0_i32_0 = arith.constant 0 : i32
    %c0_i32_1 = arith.constant 0 : i32
    return %c0_i32, %c0_i32_0 : i32, i32
  }
  func.func @transform_5(%arg0: i32) -> (i32, i32, i32) {
    %c0_i32 = arith.constant 0 : i32
    %c0_i32_0 = arith.constant 0 : i32
    %c0_i32_1 = arith.constant 0 : i32
    %c0_i32_2 = arith.constant 0 : i32
    return %c0_i32, %c0_i32_0, %c0_i32_1 : i32, i32, i32
  }
  func.func @transform_6(%arg0: i32) -> (i32, i32) {
    %c0_i32 = arith.constant 0 : i32
    %c0_i32_0 = arith.constant 0 : i32
    %c0_i32_1 = arith.constant 0 : i32
    return %c0_i32, %c0_i32_0 : i32, i32
  }
  func.func @transform_7(%arg0: i32) -> (i32, i32) {
    %c0_i32 = arith.constant 0 : i32
    %c0_i32_0 = arith.constant 0 : i32
    %c0_i32_1 = arith.constant 0 : i32
    return %c0_i32, %c0_i32_0 : i32, i32
  }
  func.func @transform_8(%arg0: i32) -> (i32, i32) {
    %c0_i32 = arith.constant 0 : i32
    %c0_i32_0 = arith.constant 0 : i32
    %c0_i32_1 = arith.constant 0 : i32
    return %c0_i32, %c0_i32_0 : i32, i32
  }
  func.func @transform_9(%arg0: i32) -> (i32, i32, i32) {
    %c0_i32 = arith.constant 0 : i32
    %c0_i32_0 = arith.constant 0 : i32
    %c0_i32_1 = arith.constant 0 : i32
    %c0_i32_2 = arith.constant 0 : i32
    return %c0_i32, %c0_i32_0, %c0_i32_1 : i32, i32, i32
  }
  func.func @transform_10(%arg0: i32) -> (i32, i32) {
    %c0_i32 = arith.constant 0 : i32
    %c0_i32_0 = arith.constant 0 : i32
    %c0_i32_1 = arith.constant 0 : i32
    return %c0_i32, %c0_i32_0 : i32, i32
  }
  func.func @transform_11(%arg0: i32) -> (i32, i32) {
    %c0_i32 = arith.constant 0 : i32
    %c0_i32_0 = arith.constant 0 : i32
    %c0_i32_1 = arith.constant 0 : i32
    return %c0_i32, %c0_i32_0 : i32, i32
  }
  func.func @transform_12(%arg0: i32) -> (i32, i32) {
    %c0_i32 = arith.constant 0 : i32
    %c0_i32_0 = arith.constant 0 : i32
    %c0_i32_1 = arith.constant 0 : i32
    return %c0_i32, %c0_i32_0 : i32, i32
  }
  func.func @transform_13(%arg0: i32) -> (i32, i32) {
    %c0_i32 = arith.constant 0 : i32
    %c0_i32_0 = arith.constant 0 : i32
    %c0_i32_1 = arith.constant 0 : i32
    return %c0_i32, %c0_i32_0 : i32, i32
  }
  func.func @transform_14(%arg0: i32) -> (i32, i32) {
    %c0_i32 = arith.constant 0 : i32
    %c0_i32_0 = arith.constant 0 : i32
    %c0_i32_1 = arith.constant 0 : i32
    return %c0_i32, %c0_i32_0 : i32, i32
  }
  func.func @transform_15(%arg0: i32) -> (i32, i32, i32) {
    %c0_i32 = arith.constant 0 : i32
    %c0_i32_0 = arith.constant 0 : i32
    %c0_i32_1 = arith.constant 0 : i32
    return %arg0, %c0_i32, %c0_i32_0 : i32, i32, i32
  }
}

</mosaic_0001>

<llo_original>
// kernel: lenet5_forward.1
$region0: #{lenet5_forward.1}
  #allocation0 [shape = 'u32[]', space=smem, size = 0x4, offset = 0x4, fixed_abs, tag = 'smem constant byte address 0x4 - core index']
  #allocation1 [shape = 'u32[72,128]{1,0:T(1,128)}', space=vmem, size = 0x9000, scoped, tag = 'internal scratch']
  %s0 = inlined_call_operand.vmem [shape: f32[2,32,32], index: 0, kind: input, shape index: {}]
  %s1 = inlined_call_operand.vmem [shape: bf16[5,32,168], index: 1, kind: input, shape index: {}]
  %s2 = inlined_call_operand.vmem [shape: f32[1,168], index: 2, kind: input, shape index: {}]
  %s3 = inlined_call_operand.vmem [shape: bf16[162,84], index: 3, kind: input, shape index: {}]
  %s4 = inlined_call_operand.vmem [shape: bf16[14,27], index: 4, kind: input, shape index: {}]
  %s5 = inlined_call_operand.vmem [shape: bf16[5,84,160], index: 5, kind: input, shape index: {}]
  %s6 = inlined_call_operand.vmem [shape: f32[1,160], index: 6, kind: input, shape index: {}]
  %s7 = inlined_call_operand.vmem [shape: bf16[144,80], index: 7, kind: input, shape index: {}]
  %s8 = inlined_call_operand.vmem [shape: bf16[5,9], index: 8, kind: input, shape index: {}]
  %s9 = inlined_call_operand.vmem [shape: bf16[5,80,120], index: 9, kind: input, shape index: {}]
  %s10 = inlined_call_operand.vmem [shape: f32[1,120], index: 10, kind: input, shape index: {}]
  %s11 = inlined_call_operand.vmem [shape: bf16[120,84], index: 11, kind: input, shape index: {}]
  %s12 = inlined_call_operand.vmem [shape: f32[1,84], index: 12, kind: input, shape index: {}]
  %s13 = inlined_call_operand.vmem [shape: bf16[84,10], index: 13, kind: input, shape index: {}]
  %s14 = inlined_call_operand.vmem [shape: f32[1,10], index: 14, kind: input, shape index: {}]
  %s15 = inlined_call_operand.hbm [shape: f32[2,1,10], index: 15, kind: output, shape index: {}]
  %s16 = sld [smem:[#allocation0]]
  $region93: #{lenet5_forward.1} parent=0
    _
  %s18 = ssub.s32 1, %s16
  %s19 = scalar_select 0, %s18, %s16
  $region1: #{lenet5_forward.1} parent=0
    #allocation2 [shape = 'u8[1024]{0}', space=vmem, size = 0x400, scoped, tag = 'output window, operand 0']
    #allocation3 [shape = 's32[2]{0}', space=sflag, size = 0x8, scoped, tag = 'scoped memory for lenet5_forward.1']
    %20 = vsyncpa [#allocation3], 0
    %s21 = scalar_lea.sflag [#allocation3], 1
    %22 = vsyncpa %s21, 0
    loop: start=0, step=1, limit=4
    $region2: #{lenet5_forward.1} parent=1 // loop_pre_header
      _
    $region3: #{lenet5_forward.1} parent=1 // loop_header
      %s24 = sphi 0, %s28
      %p25 = scmp.ge.s32.totalorder %s24, 4
      %s34 = sphi 0, %s36
      %s37 = sphi 0, %s34
      %s38 = sphi 0, %s37
      %s54 = sphi 0, %s38
      %s58 = sphi 0, %s58
      %s60 = sphi 0, %s58
      %s61 = sphi 0, %s60
      %s75 = sphi 0, %s61
      %s79 = sphi 0, %s79
      %s81 = sphi 0, %s79
      %s82 = sphi 0, %s81
      %s96 = sphi 0, %s82
      %s100 = sphi 0, %s100
      %s102 = sphi 0, %s100
      %s103 = sphi 0, %s102
      %s117 = sphi 0, %s103
      %s121 = sphi 0, %s121
      %s123 = sphi 0, %s121
      %s124 = sphi 0, %s123
      %s138 = sphi 0, %s124
      %s142 = sphi 0, %s142
      %s144 = sphi 0, %s142
      %s145 = sphi 0, %s144
      %s159 = sphi 0, %s145
      %s163 = sphi 0, %s163
      %s165 = sphi 0, %s163
      %s166 = sphi 0, %s165
      %s180 = sphi 0, %s166
      %s184 = sphi 0, %s184
      %s186 = sphi 0, %s184
      %s187 = sphi 0, %s186
      %s201 = sphi 0, %s187
      %s205 = sphi 0, %s205
      %s207 = sphi 0, %s205
      %s208 = sphi 0, %s207
      %s222 = sphi 0, %s208
      %s226 = sphi 0, %s226
      %s228 = sphi 0, %s226
      %s229 = sphi 0, %s228
      %s243 = sphi 0, %s229
      %s247 = sphi 0, %s247
      %s249 = sphi 0, %s247
      %s250 = sphi 0, %s249
      %s264 = sphi 0, %s250
      %s268 = sphi 0, %s268
      %s270 = sphi 0, %s268
      %s271 = sphi 0, %s270
      %s285 = sphi 0, %s271
      %s289 = sphi 0, %s289
      %s291 = sphi 0, %s289
      %s292 = sphi 0, %s291
      %s306 = sphi 0, %s292
      %s310 = sphi 0, %s310
      %s312 = sphi 0, %s310
      %s313 = sphi 0, %s312
      %s327 = sphi 0, %s313
      %s331 = sphi 0, %s331
      %s333 = sphi 0, %s331
      %s334 = sphi 0, %s333
      %s348 = sphi 0, %s334
      %s354 = sphi 0, %s356
      %s357 = sphi 0, %s354
      %s358 = sphi 0, %s357
      %s374 = sphi 0, %s358
    $region4: #{lenet5_forward.1} parent=1 // loop_header_branch
      %27 = sbr.rel (%p25) target = $region8
    $region5: #{lenet5_forward.1} parent=1 // loop_body
      %s29 = ssub.s32 %s24, 1
      %s30 = ssub.s32 %s24, 2
      %s31 = sadd.s32 %s24, 1
      %s32 = ssub.s32 %s24, %s31
      %p33 = scmp.eq.s32.totalorder %s32, 0
      %s35 = sadd.s32 %s34, 1
      %s36 = scalar_select %p33, %s34, %s35
      %p39 = pneg %p33
      %p40 = scmp.eq.s32.totalorder %s24, 1
      %p41 = por %p39, %p40
      %p42 = scmp.ne.s32.totalorder %s34, %s37
      %p43 = scmp.eq.s32.totalorder %s24, 0
      %p44 = por %p42, %p43
      %p45 = scmp.ne.s32.totalorder %s34, %s37
      %p46 = scmp.eq.s32.totalorder %s29, 1
      %p47 = por %p45, %p46
      %p48 = scmp.ne.s32.totalorder %s37, %s38
      %p49 = scmp.eq.s32.totalorder %s29, 0
      %p50 = por %p48, %p49
      %p51 = scmp.ne.s32.totalorder %s37, %s38
      %p52 = scmp.eq.s32.totalorder %s30, 1
      %p53 = por %p51, %p52
      %p55 = scmp.ne.s32.totalorder %s38, %s54
      %p56 = scmp.eq.s32.totalorder %s30, 0
      %p57 = por %p55, %p56
      %s59 = sadd.s32 %s58, 1
      %p62 = scmp.eq.s32.totalorder %s24, 1
      %p63 = scmp.ne.s32.totalorder %s58, %s60
      %p64 = scmp.eq.s32.totalorder %s24, 0
      %p65 = por %p63, %p64
      %p66 = scmp.ne.s32.totalorder %s58, %s60
      %p67 = scmp.eq.s32.totalorder %s29, 1
      %p68 = por %p66, %p67
      %p69 = scmp.ne.s32.totalorder %s60, %s61
      %p70 = scmp.eq.s32.totalorder %s29, 0
      %p71 = por %p69, %p70
      %p72 = scmp.ne.s32.totalorder %s60, %s61
      %p73 = scmp.eq.s32.totalorder %s30, 1
      %p74 = por %p72, %p73
      %p76 = scmp.ne.s32.totalorder %s61, %s75
      %p77 = scmp.eq.s32.totalorder %s30, 0
      %p78 = por %p76, %p77
      %s80 = sadd.s32 %s79, 1
      %p83 = scmp.eq.s32.totalorder %s24, 1
      %p84 = scmp.ne.s32.totalorder %s79, %s81
      %p85 = scmp.eq.s32.totalorder %s24, 0
      %p86 = por %p84, %p85
      %p87 = scmp.ne.s32.totalorder %s79, %s81
      %p88 = scmp.eq.s32.totalorder %s29, 1
      %p89 = por %p87, %p88
      %p90 = scmp.ne.s32.totalorder %s81, %s82
      %p91 = scmp.eq.s32.totalorder %s29, 0
      %p92 = por %p90, %p91
      %p93 = scmp.ne.s32.totalorder %s81, %s82
      %p94 = scmp.eq.s32.totalorder %s30, 1
      %p95 = por %p93, %p94
      %p97 = scmp.ne.s32.totalorder %s82, %s96
      %p98 = scmp.eq.s32.totalorder %s30, 0
      %p99 = por %p97, %p98
      %s101 = sadd.s32 %s100, 1
      %p104 = scmp.eq.s32.totalorder %s24, 1
      %p105 = scmp.ne.s32.totalorder %s100, %s102
      %p106 = scmp.eq.s32.totalorder %s24, 0
      %p107 = por %p105, %p106
      %p108 = scmp.ne.s32.totalorder %s100, %s102
      %p109 = scmp.eq.s32.totalorder %s29, 1
      %p110 = por %p108, %p109
      %p111 = scmp.ne.s32.totalorder %s102, %s103
      %p112 = scmp.eq.s32.totalorder %s29, 0
      %p113 = por %p111, %p112
      %p114 = scmp.ne.s32.totalorder %s102, %s103
      %p115 = scmp.eq.s32.totalorder %s30, 1
      %p116 = por %p114, %p115
      %p118 = scmp.ne.s32.totalorder %s103, %s117
      %p119 = scmp.eq.s32.totalorder %s30, 0
      %p120 = por %p118, %p119
      %s122 = sadd.s32 %s121, 1
      %p125 = scmp.eq.s32.totalorder %s24, 1
      %p126 = scmp.ne.s32.totalorder %s121, %s123
      %p127 = scmp.eq.s32.totalorder %s24, 0
      %p128 = por %p126, %p127
      %p129 = scmp.ne.s32.totalorder %s121, %s123
      %p130 = scmp.eq.s32.totalorder %s29, 1
      %p131 = por %p129, %p130
      %p132 = scmp.ne.s32.totalorder %s123, %s124
      %p133 = scmp.eq.s32.totalorder %s29, 0
      %p134 = por %p132, %p133
      %p135 = scmp.ne.s32.totalorder %s123, %s124
      %p136 = scmp.eq.s32.totalorder %s30, 1
      %p137 = por %p135, %p136
      %p139 = scmp.ne.s32.totalorder %s124, %s138
      %p140 = scmp.eq.s32.totalorder %s30, 0
      %p141 = por %p139, %p140
      %s143 = sadd.s32 %s142, 1
      %p146 = scmp.eq.s32.totalorder %s24, 1
      %p147 = scmp.ne.s32.totalorder %s142, %s144
      %p148 = scmp.eq.s32.totalorder %s24, 0
      %p149 = por %p147, %p148
      %p150 = scmp.ne.s32.totalorder %s142, %s144
      %p151 = scmp.eq.s32.totalorder %s29, 1
      %p152 = por %p150, %p151
      %p153 = scmp.ne.s32.totalorder %s144, %s145
      %p154 = scmp.eq.s32.totalorder %s29, 0
      %p155 = por %p153, %p154
      %p156 = scmp.ne.s32.totalorder %s144, %s145
      %p157 = scmp.eq.s32.totalorder %s30, 1
      %p158 = por %p156, %p157
      %p160 = scmp.ne.s32.totalorder %s145, %s159
      %p161 = scmp.eq.s32.totalorder %s30, 0
      %p162 = por %p160, %p161
      %s164 = sadd.s32 %s163, 1
      %p167 = scmp.eq.s32.totalorder %s24, 1
      %p168 = scmp.ne.s32.totalorder %s163, %s165
      %p169 = scmp.eq.s32.totalorder %s24, 0
      %p170 = por %p168, %p169
      %p171 = scmp.ne.s32.totalorder %s163, %s165
      %p172 = scmp.eq.s32.totalorder %s29, 1
      %p173 = por %p171, %p172
      %p174 = scmp.ne.s32.totalorder %s165, %s166
      %p175 = scmp.eq.s32.totalorder %s29, 0
      %p176 = por %p174, %p175
      %p177 = scmp.ne.s32.totalorder %s165, %s166
      %p178 = scmp.eq.s32.totalorder %s30, 1
      %p179 = por %p177, %p178
      %p181 = scmp.ne.s32.totalorder %s166, %s180
      %p182 = scmp.eq.s32.totalorder %s30, 0
      %p183 = por %p181, %p182
      %s185 = sadd.s32 %s184, 1
      %p188 = scmp.eq.s32.totalorder %s24, 1
      %p189 = scmp.ne.s32.totalorder %s184, %s186
      %p190 = scmp.eq.s32.totalorder %s24, 0
      %p191 = por %p189, %p190
      %p192 = scmp.ne.s32.totalorder %s184, %s186
      %p193 = scmp.eq.s32.totalorder %s29, 1
      %p194 = por %p192, %p193
      %p195 = scmp.ne.s32.totalorder %s186, %s187
      %p196 = scmp.eq.s32.totalorder %s29, 0
      %p197 = por %p195, %p196
      %p198 = scmp.ne.s32.totalorder %s186, %s187
      %p199 = scmp.eq.s32.totalorder %s30, 1
      %p200 = por %p198, %p199
      %p202 = scmp.ne.s32.totalorder %s187, %s201
      %p203 = scmp.eq.s32.totalorder %s30, 0
      %p204 = por %p202, %p203
      %s206 = sadd.s32 %s205, 1
      %p209 = scmp.eq.s32.totalorder %s24, 1
      %p210 = scmp.ne.s32.totalorder %s205, %s207
      %p211 = scmp.eq.s32.totalorder %s24, 0
      %p212 = por %p210, %p211
      %p213 = scmp.ne.s32.totalorder %s205, %s207
      %p214 = scmp.eq.s32.totalorder %s29, 1
      %p215 = por %p213, %p214
      %p216 = scmp.ne.s32.totalorder %s207, %s208
      %p217 = scmp.eq.s32.totalorder %s29, 0
      %p218 = por %p216, %p217
      %p219 = scmp.ne.s32.totalorder %s207, %s208
      %p220 = scmp.eq.s32.totalorder %s30, 1
      %p221 = por %p219, %p220
      %p223 = scmp.ne.s32.totalorder %s208, %s222
      %p224 = scmp.eq.s32.totalorder %s30, 0
      %p225 = por %p223, %p224
      %s227 = sadd.s32 %s226, 1
      %p230 = scmp.eq.s32.totalorder %s24, 1
      %p231 = scmp.ne.s32.totalorder %s226, %s228
      %p232 = scmp.eq.s32.totalorder %s24, 0
      %p233 = por %p231, %p232
      %p234 = scmp.ne.s32.totalorder %s226, %s228
      %p235 = scmp.eq.s32.totalorder %s29, 1
      %p236 = por %p234, %p235
      %p237 = scmp.ne.s32.totalorder %s228, %s229
      %p238 = scmp.eq.s32.totalorder %s29, 0
      %p239 = por %p237, %p238
      %p240 = scmp.ne.s32.totalorder %s228, %s229
      %p241 = scmp.eq.s32.totalorder %s30, 1
      %p242 = por %p240, %p241
      %p244 = scmp.ne.s32.totalorder %s229, %s243
      %p245 = scmp.eq.s32.totalorder %s30, 0
      %p246 = por %p244, %p245
      %s248 = sadd.s32 %s247, 1
      %p251 = scmp.eq.s32.totalorder %s24, 1
      %p252 = scmp.ne.s32.totalorder %s247, %s249
      %p253 = scmp.eq.s32.totalorder %s24, 0
      %p254 = por %p252, %p253
      %p255 = scmp.ne.s32.totalorder %s247, %s249
      %p256 = scmp.eq.s32.totalorder %s29, 1
      %p257 = por %p255, %p256
      %p258 = scmp.ne.s32.totalorder %s249, %s250
      %p259 = scmp.eq.s32.totalorder %s29, 0
      %p260 = por %p258, %p259
      %p261 = scmp.ne.s32.totalorder %s249, %s250
      %p262 = scmp.eq.s32.totalorder %s30, 1
      %p263 = por %p261, %p262
      %p265 = scmp.ne.s32.totalorder %s250, %s264
      %p266 = scmp.eq.s32.totalorder %s30, 0
      %p267 = por %p265, %p266
      %s269 = sadd.s32 %s268, 1
      %p272 = scmp.eq.s32.totalorder %s24, 1
      %p273 = scmp.ne.s32.totalorder %s268, %s270
      %p274 = scmp.eq.s32.totalorder %s24, 0
      %p275 = por %p273, %p274
      %p276 = scmp.ne.s32.totalorder %s268, %s270
      %p277 = scmp.eq.s32.totalorder %s29, 1
      %p278 = por %p276, %p277
      %p279 = scmp.ne.s32.totalorder %s270, %s271
      %p280 = scmp.eq.s32.totalorder %s29, 0
      %p281 = por %p279, %p280
      %p282 = scmp.ne.s32.totalorder %s270, %s271
      %p283 = scmp.eq.s32.totalorder %s30, 1
      %p284 = por %p282, %p283
      %p286 = scmp.ne.s32.totalorder %s271, %s285
      %p287 = scmp.eq.s32.totalorder %s30, 0
      %p288 = por %p286, %p287
      %s290 = sadd.s32 %s289, 1
      %p293 = scmp.eq.s32.totalorder %s24, 1
      %p294 = scmp.ne.s32.totalorder %s289, %s291
      %p295 = scmp.eq.s32.totalorder %s24, 0
      %p296 = por %p294, %p295
      %p297 = scmp.ne.s32.totalorder %s289, %s291
      %p298 = scmp.eq.s32.totalorder %s29, 1
      %p299 = por %p297, %p298
      %p300 = scmp.ne.s32.totalorder %s291, %s292
      %p301 = scmp.eq.s32.totalorder %s29, 0
      %p302 = por %p300, %p301
      %p303 = scmp.ne.s32.totalorder %s291, %s292
      %p304 = scmp.eq.s32.totalorder %s30, 1
      %p305 = por %p303, %p304
      %p307 = scmp.ne.s32.totalorder %s292, %s306
      %p308 = scmp.eq.s32.totalorder %s30, 0
      %p309 = por %p307, %p308
      %s311 = sadd.s32 %s310, 1
      %p314 = scmp.eq.s32.totalorder %s24, 1
      %p315 = scmp.ne.s32.totalorder %s310, %s312
      %p316 = scmp.eq.s32.totalorder %s24, 0
      %p317 = por %p315, %p316
      %p318 = scmp.ne.s32.totalorder %s310, %s312
      %p319 = scmp.eq.s32.totalorder %s29, 1
      %p320 = por %p318, %p319
      %p321 = scmp.ne.s32.totalorder %s312, %s313
      %p322 = scmp.eq.s32.totalorder %s29, 0
      %p323 = por %p321, %p322
      %p324 = scmp.ne.s32.totalorder %s312, %s313
      %p325 = scmp.eq.s32.totalorder %s30, 1
      %p326 = por %p324, %p325
      %p328 = scmp.ne.s32.totalorder %s313, %s327
      %p329 = scmp.eq.s32.totalorder %s30, 0
      %p330 = por %p328, %p329
      %s332 = sadd.s32 %s331, 1
      %p335 = scmp.eq.s32.totalorder %s24, 1
      %p336 = scmp.ne.s32.totalorder %s331, %s333
      %p337 = scmp.eq.s32.totalorder %s24, 0
      %p338 = por %p336, %p337
      %p339 = scmp.ne.s32.totalorder %s331, %s333
      %p340 = scmp.eq.s32.totalorder %s29, 1
      %p341 = por %p339, %p340
      %p342 = scmp.ne.s32.totalorder %s333, %s334
      %p343 = scmp.eq.s32.totalorder %s29, 0
      %p344 = por %p342, %p343
      %p345 = scmp.ne.s32.totalorder %s333, %s334
      %p346 = scmp.eq.s32.totalorder %s30, 1
      %p347 = por %p345, %p346
      %p349 = scmp.ne.s32.totalorder %s334, %s348
      %p350 = scmp.eq.s32.totalorder %s30, 0
      %p351 = por %p349, %p350
      %s352 = ssub.s32 %s24, %s31
      %p353 = scmp.eq.s32.totalorder %s352, 0
      %s355 = sadd.s32 %s354, 1
      %s356 = scalar_select %p353, %s354, %s355
      %p359 = pneg %p353
      %p360 = scmp.eq.s32.totalorder %s24, 1
      %p361 = por %p359, %p360
      %p362 = scmp.ne.s32.totalorder %s354, %s357
      %p363 = scmp.eq.s32.totalorder %s24, 0
      %p364 = por %p362, %p363
      %p365 = scmp.ne.s32.totalorder %s354, %s357
      %p366 = scmp.eq.s32.totalorder %s29, 1
      %p367 = por %p365, %p366
      %p368 = scmp.ne.s32.totalorder %s357, %s358
      %p369 = scmp.eq.s32.totalorder %s29, 0
      %p370 = por %p368, %p369
      %p371 = scmp.ne.s32.totalorder %s357, %s358
      %p372 = scmp.eq.s32.totalorder %s30, 1
      %p373 = por %p371, %p372
      %p375 = scmp.ne.s32.totalorder %s358, %s374
      %p376 = scmp.eq.s32.totalorder %s30, 0
      %p377 = por %p375, %p376
      %p378 = scmp.le.s32.totalorder 1, %s24
      %p379 = scmp.lt.s32.totalorder %s24, 3
      %p380 = pnand %p378, %p379
      %p381 = pneg %p380
      // Predicated region
      $region9: #{lenet5_forward.1} parent=5 // pred_check
        _
      $region10: #{lenet5_forward.1} parent=5 // pred_check_branch
        %383 = sbr.rel (%p380) target = $region12
      $region11: #{lenet5_forward.1} parent=5 // pred_region
        %s384 = ssub.s32 %s24, 1
        // Predicated region
        $region13: #{lenet5_forward.1} parent=11 // pred_check
          %p385 = pneg %p71
        $region14: #{lenet5_forward.1} parent=11 // pred_check_branch
          %387 = sbr.rel (%p385) target = $region16
        $region15: #{lenet5_forward.1} parent=11 // pred_region
          _
        $region16: #{lenet5_forward.1} parent=11 // pred_fallthru
          _
        // Predicated region
        $region17: #{lenet5_forward.1} parent=11 // pred_check
          %p388 = pneg %p92
        $region18: #{lenet5_forward.1} parent=11 // pred_check_branch
          %390 = sbr.rel (%p388) target = $region20
        $region19: #{lenet5_forward.1} parent=11 // pred_region
          _
        $region20: #{lenet5_forward.1} parent=11 // pred_fallthru
          _
        // Predicated region
        $region21: #{lenet5_forward.1} parent=11 // pred_check
          %p391 = pneg %p113
        $region22: #{lenet5_forward.1} parent=11 // pred_check_branch
          %393 = sbr.rel (%p391) target = $region24
        $region23: #{lenet5_forward.1} parent=11 // pred_region
          _
        $region24: #{lenet5_forward.1} parent=11 // pred_fallthru
          _
        // Predicated region
        $region25: #{lenet5_forward.1} parent=11 // pred_check
          %p394 = pneg %p134
        $region26: #{lenet5_forward.1} parent=11 // pred_check_branch
          %396 = sbr.rel (%p394) target = $region28
        $region27: #{lenet5_forward.1} parent=11 // pred_region
          _
        $region28: #{lenet5_forward.1} parent=11 // pred_fallthru
          _
        // Predicated region
        $region29: #{lenet5_forward.1} parent=11 // pred_check
          %p397 = pneg %p155
        $region30: #{lenet5_forward.1} parent=11 // pred_check_branch
          %399 = sbr.rel (%p397) target = $region32
        $region31: #{lenet5_forward.1} parent=11 // pred_region
          _
        $region32: #{lenet5_forward.1} parent=11 // pred_fallthru
          _
        // Predicated region
        $region33: #{lenet5_forward.1} parent=11 // pred_check
          %p400 = pneg %p176
        $region34: #{lenet5_forward.1} parent=11 // pred_check_branch
          %402 = sbr.rel (%p400) target = $region36
        $region35: #{lenet5_forward.1} parent=11 // pred_region
          _
        $region36: #{lenet5_forward.1} parent=11 // pred_fallthru
          _
        // Predicated region
        $region37: #{lenet5_forward.1} parent=11 // pred_check
          %p403 = pneg %p197
        $region38: #{lenet5_forward.1} parent=11 // pred_check_branch
          %405 = sbr.rel (%p403) target = $region40
        $region39: #{lenet5_forward.1} parent=11 // pred_region
          _
        $region40: #{lenet5_forward.1} parent=11 // pred_fallthru
          _
        // Predicated region
        $region41: #{lenet5_forward.1} parent=11 // pred_check
          %p406 = pneg %p218
        $region42: #{lenet5_forward.1} parent=11 // pred_check_branch
          %408 = sbr.rel (%p406) target = $region44
        $region43: #{lenet5_forward.1} parent=11 // pred_region
          _
        $region44: #{lenet5_forward.1} parent=11 // pred_fallthru
          _
        // Predicated region
        $region45: #{lenet5_forward.1} parent=11 // pred_check
          %p409 = pneg %p239
        $region46: #{lenet5_forward.1} parent=11 // pred_check_branch
          %411 = sbr.rel (%p409) target = $region48
        $region47: #{lenet5_forward.1} parent=11 // pred_region
          _
        $region48: #{lenet5_forward.1} parent=11 // pred_fallthru
          _
        // Predicated region
        $region49: #{lenet5_forward.1} parent=11 // pred_check
          %p412 = pneg %p260
        $region50: #{lenet5_forward.1} parent=11 // pred_check_branch
          %414 = sbr.rel (%p412) target = $region52
        $region51: #{lenet5_forward.1} parent=11 // pred_region
          _
        $region52: #{lenet5_forward.1} parent=11 // pred_fallthru
          _
        // Predicated region
        $region53: #{lenet5_forward.1} parent=11 // pred_check
          %p415 = pneg %p281
        $region54: #{lenet5_forward.1} parent=11 // pred_check_branch
          %417 = sbr.rel (%p415) target = $region56
        $region55: #{lenet5_forward.1} parent=11 // pred_region
          _
        $region56: #{lenet5_forward.1} parent=11 // pred_fallthru
          _
        // Predicated region
        $region57: #{lenet5_forward.1} parent=11 // pred_check
          %p418 = pneg %p302
        $region58: #{lenet5_forward.1} parent=11 // pred_check_branch
          %420 = sbr.rel (%p418) target = $region60
        $region59: #{lenet5_forward.1} parent=11 // pred_region
          _
        $region60: #{lenet5_forward.1} parent=11 // pred_fallthru
          _
        // Predicated region
        $region61: #{lenet5_forward.1} parent=11 // pred_check
          %p421 = pneg %p323
        $region62: #{lenet5_forward.1} parent=11 // pred_check_branch
          %423 = sbr.rel (%p421) target = $region64
        $region63: #{lenet5_forward.1} parent=11 // pred_region
          _
        $region64: #{lenet5_forward.1} parent=11 // pred_fallthru
          _
        // Predicated region
        $region65: #{lenet5_forward.1} parent=11 // pred_check
          %p424 = pneg %p344
        $region66: #{lenet5_forward.1} parent=11 // pred_check_branch
          %426 = sbr.rel (%p424) target = $region68
        $region67: #{lenet5_forward.1} parent=11 // pred_region
          _
        $region68: #{lenet5_forward.1} parent=11 // pred_fallthru
          _
      $region12: #{lenet5_forward.1} parent=5 // pred_fallthru
        _
      %p427 = scmp.lt.s32.totalorder %s24, 2
      // Predicated region
      $region69: #{lenet5_forward.1} parent=5 // pred_check
        %p428 = pneg %p427
      $region70: #{lenet5_forward.1} parent=5 // pred_check_branch
        %430 = sbr.rel (%p428) target = $region72
      $region71: #{lenet5_forward.1} parent=5 // pred_region
        // Predicated region
        $region73: #{lenet5_forward.1} parent=71 // pred_check
          %p431 = pneg %p44
        $region74: #{lenet5_forward.1} parent=71 // pred_check_branch
          %433 = sbr.rel (%p431) target = $region76
        $region75: #{lenet5_forward.1} parent=71 // pred_region
          %p434 = scmp.lt.s32.totalorder %s24, 1
          %s435 = scalar_select %p434, %s24, 1
          %s436 = smul.addr %s435, 4
          %s437 = smul.addr %s436, 8
          %s438 = scalar_lea.vmem %s0, %s437
        $region76: #{lenet5_forward.1} parent=71 // pred_fallthru
          _
      $region72: #{lenet5_forward.1} parent=5 // pred_fallthru
        _
      %p439 = scmp.le.s32.totalorder 1, %s24
      %p440 = scmp.lt.s32.totalorder %s24, 3
      %p441 = pnand %p439, %p440
      %p442 = pneg %p441
      // Predicated region
      $region77: #{lenet5_forward.1} parent=5 // pred_check
        _
      $region78: #{lenet5_forward.1} parent=5 // pred_check_branch
        %444 = sbr.rel (%p441) target = $region80
      $region79: #{lenet5_forward.1} parent=5 // pred_region
        %s445 = ssub.s32 %s24, 1
        %p446 = scmp.lt.s32.totalorder %s29, 1
        %s447 = scalar_select %p446, %s29, 1
        %s448 = smul.addr %s447, 4
        %s449 = smul.addr %s448, 8
        %s450 = scalar_lea.vmem %s0, %s449
        %p451 = pneg %p50
        %p452 = pneg %p47
        %p453 = pneg %p71
        %p454 = pneg %p68
        %p455 = pneg %p92
        %p456 = pneg %p89
        %p457 = pneg %p113
        %p458 = pneg %p110
        %p459 = pneg %p134
        %p460 = pneg %p131
        %p461 = pneg %p155
        %p462 = pneg %p152
        %p463 = pneg %p176
        %p464 = pneg %p173
        %p465 = pneg %p197
        %p466 = pneg %p194
        %p467 = pneg %p218
        %p468 = pneg %p215
        %p469 = pneg %p239
        %p470 = pneg %p236
        %p471 = pneg %p260
        %p472 = pneg %p257
        %p473 = pneg %p281
        %p474 = pneg %p278
        %p475 = pneg %p302
        %p476 = pneg %p299
        %p477 = pneg %p323
        %p478 = pneg %p320
        %p479 = pneg %p344
        %p480 = pneg %p341
        %p481 = pneg %p370
        %p482 = pneg %p367
        %s483 = sand.u32 %s357, 1
        %s484 = scalar_lea.sflag [#allocation3], %s483
        %s485 = sand.u32 %s357, 1
        %s486 = scalar_lea.vmem [#allocation2], %s485
        %p487 = scmp.lt.s32.totalorder %s29, 1
        %s488 = scalar_select %p487, %s29, 1
        %s489 = smul.addr %s488, 4
        %s490 = smul.addr %s489, 8
        %s491 = scalar_lea.vmem %s0, %s490
        %v493 = vld [vmem:[%s491] sm:$0xff]
        %v494 = vld [vmem:[%s491 + $0x8] sm:$0xff]
        %v495 = vld [vmem:[%s491 + $0x10] sm:$0xff]
        %v496 = vld [vmem:[%s491 + $0x18] sm:$0xff]
        %v497 = vld [vmem:[%s1] sm:$0xff]
        %v498 = vld [vmem:[%s1 + $0x8] sm:$0xff]
        %v499 = vld [vmem:[%s1 + $0x10] sm:$0xff]
        %v500 = vld [vmem:[%s1 + $0x18] sm:$0xff]
        %v501 = vpack.c.bf16 %v494, %v493
        %v502 = vpack.c.bf16 %v496, %v495
        %s503 = scalar_lea.vmem %s1, 32
        %v504 = vld [vmem:[%s503] sm:$0xff]
        %v505 = vld [vmem:[%s503 + $0x8] sm:$0xff]
        %v506 = vld [vmem:[%s503 + $0x10] sm:$0xff]
        %v507 = vld [vmem:[%s503 + $0x18] sm:$0xff]
        %s508 = scalar_lea.vmem %s1, 64
        %v509 = vld [vmem:[%s508] sm:$0xff]
        %v510 = vld [vmem:[%s508 + $0x8] sm:$0xff]
        %v511 = vld [vmem:[%s508 + $0x10] sm:$0xff]
        %v512 = vld [vmem:[%s508 + $0x18] sm:$0xff]
        %vm515 = vcmask 1046528
        %v516 = vrot.slane %v501, 1
        %v517 = vrot.slane %v502, 1
        %v518 = vsel %vm515, %v516, %v517
        %v523 = vunpack.c.l.b16 %v509
        %v524 = vunpack.c.h.b16 %v509
        %v525 = vunpack.c.l.b16 %v510
        %v526 = vunpack.c.h.b16 %v510
        %v527 = vunpack.c.l.b16 %v511
        %v528 = vunpack.c.h.b16 %v511
        %v529 = vunpack.c.l.b16 %v512
        %v530 = vunpack.c.h.b16 %v512
        %v531 = vpack.c.b16 %v525, %v523
        %v532 = vpack.c.b16 %v526, %v524
        %v533 = vpack.c.b16 %v529, %v527
        %v534 = vpack.c.b16 %v530, %v528
        %vm539 = vcmask 261120
        %v541 = vsel %vm539, %v518, 0
        %v544 = vsel %vm539, %v517, 0
        %546 = vmatpush.bf16.msra.mxu0 0
        %547 = vmatpush.bf16.msra.mxu0 0
        %548 = vmatpush.bf16.msra.mxu0 0
        %549 = vmatpush.bf16.msra.mxu0 0
        %550 = vmatpush.bf16.msra.mxu0 0
        %551 = vmatpush.bf16.msra.mxu0 0
        %552 = vmatpush.bf16.msra.mxu0 %v533
        %553 = vmatpush.bf16.msra.mxu0 %v531
        %554 = vmatmul.bf16.gmra.mxu0 %v541
        %v555 = vpop.f32.mrf.mxu0
        %v556 = vadd.f32 0.0, %v555
        %v557 = vpop.f32.mrf.mxu0
        %v558 = vadd.f32 0.0, %v557
        %559 = vmatmul.bf16.gmra.mxu0 %v544
        %v560 = vpop.f32.mrf.mxu0
        %v561 = vadd.f32 0.0, %v560
        %v562 = vpop.f32.mrf.mxu0
        %v563 = vadd.f32 0.0, %v562
        %564 = vdwg.mxu0
        %565 = vmatpush.bf16.msra.mxu0 0
        %566 = vmatpush.bf16.msra.mxu0 0
        %567 = vmatpush.bf16.msra.mxu0 0
        %568 = vmatpush.bf16.msra.mxu0 0
        %569 = vmatpush.bf16.msra.mxu0 0
        %570 = vmatpush.bf16.msra.mxu0 0
        %571 = vmatpush.bf16.msra.mxu0 %v534
        %572 = vmatpush.bf16.msra.mxu0 %v532
        %573 = vmatmul.bf16.gmra.mxu0 %v541
        %v574 = vpop.f32.mrf.mxu0
        %v575 = vadd.f32 0.0, %v574
        %v576 = vpop.f32.mrf.mxu0
        %v577 = vadd.f32 0.0, %v576
        %578 = vmatmul.bf16.gmra.mxu0 %v544
        %v579 = vpop.f32.mrf.mxu0
        %v580 = vadd.f32 0.0, %v579
        %v581 = vpop.f32.mrf.mxu0
        %v582 = vadd.f32 0.0, %v581
        %583 = vdwg.mxu0
        %v588 = vunpack.c.l.b16 %v497
        %v589 = vunpack.c.h.b16 %v497
        %v590 = vunpack.c.l.b16 %v498
        %v591 = vunpack.c.h.b16 %v498
        %v592 = vunpack.c.l.b16 %v499
        %v593 = vunpack.c.h.b16 %v499
        %v594 = vunpack.c.l.b16 %v500
        %v595 = vunpack.c.h.b16 %v500
        %v596 = vpack.c.b16 %v590, %v588
        %v597 = vpack.c.b16 %v591, %v589
        %v598 = vpack.c.b16 %v594, %v592
        %v599 = vpack.c.b16 %v595, %v593
        %v605 = vsel %vm539, %v501, 0
        %v608 = vsel %vm539, %v502, 0
        %610 = vmatpush.bf16.msra.mxu0 0
        %611 = vmatpush.bf16.msra.mxu0 0
        %612 = vmatpush.bf16.msra.mxu0 0
        %613 = vmatpush.bf16.msra.mxu0 0
        %614 = vmatpush.bf16.msra.mxu0 0
        %615 = vmatpush.bf16.msra.mxu0 0
        %616 = vmatpush.bf16.msra.mxu0 %v598
        %617 = vmatpush.bf16.msra.mxu0 %v596
        %618 = vmatmul.bf16.gmra.mxu0 %v605
        %v619 = vpop.f32.mrf.mxu0
        %v620 = vadd.f32 %v556, %v619
        %v621 = vpop.f32.mrf.mxu0
        %v622 = vadd.f32 %v558, %v621
        %623 = vmatmul.bf16.gmra.mxu0 %v608
        %v624 = vpop.f32.mrf.mxu0
        %v625 = vadd.f32 %v561, %v624
        %v626 = vpop.f32.mrf.mxu0
        %v627 = vadd.f32 %v563, %v626
        %628 = vdwg.mxu0
        %629 = vmatpush.bf16.msra.mxu0 0
        %630 = vmatpush.bf16.msra.mxu0 0
        %631 = vmatpush.bf16.msra.mxu0 0
        %632 = vmatpush.bf16.msra.mxu0 0
        %633 = vmatpush.bf16.msra.mxu0 0
        %634 = vmatpush.bf16.msra.mxu0 0
        %635 = vmatpush.bf16.msra.mxu0 %v599
        %636 = vmatpush.bf16.msra.mxu0 %v597
        %637 = vmatmul.bf16.gmra.mxu0 %v605
        %v638 = vpop.f32.mrf.mxu0
        %v639 = vadd.f32 %v575, %v638
        %v640 = vpop.f32.mrf.mxu0
        %v641 = vadd.f32 %v577, %v640
        %642 = vmatmul.bf16.gmra.mxu0 %v608
        %v643 = vpop.f32.mrf.mxu0
        %v644 = vadd.f32 %v580, %v643
        %v645 = vpop.f32.mrf.mxu0
        %v646 = vadd.f32 %v582, %v645
        %647 = vdwg.mxu0
        %s648 = scalar_lea.vmem %s1, 96
        %v649 = vld [vmem:[%s648] sm:$0xff]
        %v650 = vld [vmem:[%s648 + $0x8] sm:$0xff]
        %v651 = vld [vmem:[%s648 + $0x10] sm:$0xff]
        %v652 = vld [vmem:[%s648 + $0x18] sm:$0xff]
        %vm653 = vsmask.f32 6400
        %v654 = vshrl.u32 %v501, 16
        %v656 = vrot.slane %v654, 1
        %v657 = vshll.u32 %v501, 16
        %v659 = vrot.slane %v657, 2
        %v660 = vor.u32 %v656, %v659
        %v661 = vshrl.u32 %v502, 16
        %v663 = vrot.slane %v661, 1
        %v664 = vshll.u32 %v502, 16
        %v666 = vrot.slane %v664, 2
        %v667 = vor.u32 %v663, %v666
        %v668 = vsel %vm653, %v660, %v667
        %v673 = vunpack.c.l.b16 %v649
        %v674 = vunpack.c.h.b16 %v649
        %v675 = vunpack.c.l.b16 %v650
        %v676 = vunpack.c.h.b16 %v650
        %v677 = vunpack.c.l.b16 %v651
        %v678 = vunpack.c.h.b16 %v651
        %v679 = vunpack.c.l.b16 %v652
        %v680 = vunpack.c.h.b16 %v652
        %v681 = vpack.c.b16 %v675, %v673
        %v682 = vpack.c.b16 %v676, %v674
        %v683 = vpack.c.b16 %v679, %v677
        %v684 = vpack.c.b16 %v680, %v678
        %v690 = vsel %vm539, %v668, 0
        %v693 = vsel %vm539, %v667, 0
        %695 = vmatpush.bf16.msra.mxu0 0
        %696 = vmatpush.bf16.msra.mxu0 0
        %697 = vmatpush.bf16.msra.mxu0 0
        %698 = vmatpush.bf16.msra.mxu0 0
        %699 = vmatpush.bf16.msra.mxu0 0
        %700 = vmatpush.bf16.msra.mxu0 0
        %701 = vmatpush.bf16.msra.mxu0 %v683
        %702 = vmatpush.bf16.msra.mxu0 %v681
        %703 = vmatmul.bf16.gmra.mxu0 %v690
        %v704 = vpop.f32.mrf.mxu0
        %v705 = vadd.f32 0.0, %v704
        %v706 = vpop.f32.mrf.mxu0
        %v707 = vadd.f32 0.0, %v706
        %708 = vmatmul.bf16.gmra.mxu0 %v693
        %v709 = vpop.f32.mrf.mxu0
        %v710 = vadd.f32 0.0, %v709
        %v711 = vpop.f32.mrf.mxu0
        %v712 = vadd.f32 0.0, %v711
        %713 = vdwg.mxu0
        %714 = vmatpush.bf16.msra.mxu0 0
        %715 = vmatpush.bf16.msra.mxu0 0
        %716 = vmatpush.bf16.msra.mxu0 0
        %717 = vmatpush.bf16.msra.mxu0 0
        %718 = vmatpush.bf16.msra.mxu0 0
        %719 = vmatpush.bf16.msra.mxu0 0
        %720 = vmatpush.bf16.msra.mxu0 %v684
        %721 = vmatpush.bf16.msra.mxu0 %v682
        %722 = vmatmul.bf16.gmra.mxu0 %v690
        %v723 = vpop.f32.mrf.mxu0
        %v724 = vadd.f32 0.0, %v723
        %v725 = vpop.f32.mrf.mxu0
        %v726 = vadd.f32 0.0, %v725
        %727 = vmatmul.bf16.gmra.mxu0 %v693
        %v728 = vpop.f32.mrf.mxu0
        %v729 = vadd.f32 0.0, %v728
        %v730 = vpop.f32.mrf.mxu0
        %v731 = vadd.f32 0.0, %v730
        %732 = vdwg.mxu0
        %vm733 = vsmask.f32 7424
        %v734 = vrot.slane %v657, 1
        %v735 = vor.u32 %v654, %v734
        %v736 = vrot.slane %v664, 1
        %v737 = vsel %vm733, %v735, %v736
        %v738 = vor.u32 %v661, %v736
        %v743 = vunpack.c.l.b16 %v504
        %v744 = vunpack.c.h.b16 %v504
        %v745 = vunpack.c.l.b16 %v505
        %v746 = vunpack.c.h.b16 %v505
        %v747 = vunpack.c.l.b16 %v506
        %v748 = vunpack.c.h.b16 %v506
        %v749 = vunpack.c.l.b16 %v507
        %v750 = vunpack.c.h.b16 %v507
        %v751 = vpack.c.b16 %v745, %v743
        %v752 = vpack.c.b16 %v746, %v744
        %v753 = vpack.c.b16 %v749, %v747
        %v754 = vpack.c.b16 %v750, %v748
        %v760 = vsel %vm539, %v737, 0
        %v763 = vsel %vm539, %v738, 0
        %765 = vmatpush.bf16.msra.mxu0 0
        %766 = vmatpush.bf16.msra.mxu0 0
        %767 = vmatpush.bf16.msra.mxu0 0
        %768 = vmatpush.bf16.msra.mxu0 0
        %769 = vmatpush.bf16.msra.mxu0 0
        %770 = vmatpush.bf16.msra.mxu0 0
        %771 = vmatpush.bf16.msra.mxu0 %v753
        %772 = vmatpush.bf16.msra.mxu0 %v751
        %773 = vmatmul.bf16.gmra.mxu0 %v760
        %v774 = vpop.f32.mrf.mxu0
        %v775 = vadd.f32 %v705, %v774
        %v776 = vpop.f32.mrf.mxu0
        %v777 = vadd.f32 %v707, %v776
        %778 = vmatmul.bf16.gmra.mxu0 %v763
        %v779 = vpop.f32.mrf.mxu0
        %v780 = vadd.f32 %v710, %v779
        %v781 = vpop.f32.mrf.mxu0
        %v782 = vadd.f32 %v712, %v781
        %783 = vdwg.mxu0
        %784 = vmatpush.bf16.msra.mxu0 0
        %785 = vmatpush.bf16.msra.mxu0 0
        %786 = vmatpush.bf16.msra.mxu0 0
        %787 = vmatpush.bf16.msra.mxu0 0
        %788 = vmatpush.bf16.msra.mxu0 0
        %789 = vmatpush.bf16.msra.mxu0 0
        %790 = vmatpush.bf16.msra.mxu0 %v754
        %791 = vmatpush.bf16.msra.mxu0 %v752
        %792 = vmatmul.bf16.gmra.mxu0 %v760
        %v793 = vpop.f32.mrf.mxu0
        %v794 = vadd.f32 %v724, %v793
        %v795 = vpop.f32.mrf.mxu0
        %v796 = vadd.f32 %v726, %v795
        %797 = vmatmul.bf16.gmra.mxu0 %v763
        %v798 = vpop.f32.mrf.mxu0
        %v799 = vadd.f32 %v729, %v798
        %v800 = vpop.f32.mrf.mxu0
        %v801 = vadd.f32 %v731, %v800
        %802 = vdwg.mxu0
        %s803 = scalar_lea.vmem %s1, 128
        %v804 = vld [vmem:[%s803] sm:$0xff]
        %v805 = vld [vmem:[%s803 + $0x8] sm:$0xff]
        %v806 = vld [vmem:[%s803 + $0x10] sm:$0xff]
        %v807 = vld [vmem:[%s803 + $0x18] sm:$0xff]
        %vm808 = vcmask 1045504
        %v809 = vrot.slane %v501, 2
        %v810 = vrot.slane %v502, 2
        %v811 = vsel %vm808, %v809, %v810
        %v816 = vunpack.c.l.b16 %v804
        %v817 = vunpack.c.h.b16 %v804
        %v818 = vunpack.c.l.b16 %v805
        %v819 = vunpack.c.h.b16 %v805
        %v820 = vunpack.c.l.b16 %v806
        %v821 = vunpack.c.h.b16 %v806
        %v822 = vunpack.c.l.b16 %v807
        %v823 = vunpack.c.h.b16 %v807
        %v824 = vpack.c.b16 %v818, %v816
        %v825 = vpack.c.b16 %v819, %v817
        %v826 = vpack.c.b16 %v822, %v820
        %v827 = vpack.c.b16 %v823, %v821
        %v833 = vsel %vm539, %v811, 0
        %v836 = vsel %vm539, %v810, 0
        %838 = vmatpush.bf16.msra.mxu0 0
        %839 = vmatpush.bf16.msra.mxu0 0
        %840 = vmatpush.bf16.msra.mxu0 0
        %841 = vmatpush.bf16.msra.mxu0 0
        %842 = vmatpush.bf16.msra.mxu0 0
        %843 = vmatpush.bf16.msra.mxu0 0
        %844 = vmatpush.bf16.msra.mxu0 %v826
        %845 = vmatpush.bf16.msra.mxu0 %v824
        %846 = vmatmul.bf16.gmra.mxu0 %v833
        %v847 = vpop.f32.mrf.mxu0
        %v848 = vadd.f32 0.0, %v847
        %v849 = vpop.f32.mrf.mxu0
        %v850 = vadd.f32 0.0, %v849
        %851 = vmatmul.bf16.gmra.mxu0 %v836
        %v852 = vpop.f32.mrf.mxu0
        %v853 = vadd.f32 0.0, %v852
        %v854 = vpop.f32.mrf.mxu0
        %v855 = vadd.f32 0.0, %v854
        %856 = vdwg.mxu0
        %857 = vmatpush.bf16.msra.mxu0 0
        %858 = vmatpush.bf16.msra.mxu0 0
        %859 = vmatpush.bf16.msra.mxu0 0
        %860 = vmatpush.bf16.msra.mxu0 0
        %861 = vmatpush.bf16.msra.mxu0 0
        %862 = vmatpush.bf16.msra.mxu0 0
        %863 = vmatpush.bf16.msra.mxu0 %v827
        %864 = vmatpush.bf16.msra.mxu0 %v825
        %865 = vmatmul.bf16.gmra.mxu0 %v833
        %v866 = vpop.f32.mrf.mxu0
        %v867 = vadd.f32 0.0, %v866
        %v868 = vpop.f32.mrf.mxu0
        %v869 = vadd.f32 0.0, %v868
        %870 = vmatmul.bf16.gmra.mxu0 %v836
        %v871 = vpop.f32.mrf.mxu0
        %v872 = vadd.f32 0.0, %v871
        %v873 = vpop.f32.mrf.mxu0
        %v874 = vadd.f32 0.0, %v873
        %875 = vdwg.mxu0
        %v876 = vadd.f32 %v620, %v848
        %v877 = vadd.f32 %v639, %v867
        %v878 = vadd.f32 %v622, %v850
        %v879 = vadd.f32 %v641, %v869
        %v880 = vadd.f32 %v625, %v853
        %v881 = vadd.f32 %v644, %v872
        %v882 = vadd.f32 %v627, %v855
        %v883 = vadd.f32 %v646, %v874
        %v884 = vadd.f32 %v876, %v775
        %v885 = vadd.f32 %v877, %v794
        %v886 = vadd.f32 %v878, %v777
        %v887 = vadd.f32 %v879, %v796
        %v888 = vadd.f32 %v880, %v780
        %v889 = vadd.f32 %v881, %v799
        %v890 = vadd.f32 %v882, %v782
        %v891 = vadd.f32 %v883, %v801
        %v892 = vld [vmem:[%s2] sm:$0x3]
        %v894 = vperm.slane %v892, 0
        %v895 = vperm.slane %v892, 1
        %v898 = vadd.f32 %v884, %v894
        %v899 = vadd.f32 %v885, %v895
        %v900 = vadd.f32 %v886, %v894
        %v901 = vadd.f32 %v887, %v895
        %v902 = vadd.f32 %v888, %v894
        %v903 = vadd.f32 %v889, %v895
        %v904 = vadd.f32 %v890, %v894
        %v905 = vadd.f32 %v891, %v895
        %v906 = vtanh.pop %v898
        %v907 = vtanh.pop %v899
        %v908 = vtanh.pop %v900
        %v909 = vtanh.pop %v901
        %v910 = vtanh.pop %v902
        %v911 = vtanh.pop %v903
        %v912 = vtanh.pop %v904
        %v913 = vtanh.pop %v905
        %v914 = vmul.f32 %v906, 1.7159
        %v915 = vmul.f32 %v907, 1.7159
        %v916 = vmul.f32 %v908, 1.7159
        %v917 = vmul.f32 %v909, 1.7159
        %v918 = vmul.f32 %v910, 1.7159
        %v919 = vmul.f32 %v911, 1.7159
        %v920 = vmul.f32 %v912, 1.7159
        %v921 = vmul.f32 %v913, 1.7159
        %930 = vrot.lane.b32.xlu0 %v914, 122
        %v931 = vpop.permute.xlu0 %930
        %932 = vrot.lane.b32.xlu0 %v915, 122
        %v933 = vpop.permute.xlu0 %932
        %934 = vrot.lane.b32.xlu0 %v916, 122
        %v935 = vpop.permute.xlu0 %934
        %936 = vrot.lane.b32.xlu0 %v917, 122
        %v937 = vpop.permute.xlu0 %936
        %938 = vrot.lane.b32.xlu0 %v918, 122
        %v939 = vpop.permute.xlu0 %938
        %940 = vrot.lane.b32.xlu0 %v919, 122
        %v941 = vpop.permute.xlu0 %940
        %942 = vrot.lane.b32.xlu0 %v920, 122
        %v943 = vpop.permute.xlu0 %942
        %944 = vrot.lane.b32.xlu0 %v921, 122
        %v945 = vpop.permute.xlu0 %944
        %vm946 = vcmask 998400
        %v947 = vsel %vm946, %v931, %v933
        %v948 = vsel %vm946, %v935, %v937
        %v949 = vsel %vm946, %v939, %v941
        %v950 = vsel %vm946, %v943, %v945
        %v959 = vmax.f32 %v914, %v947
        %v960 = vmax.f32 %v915, %v933
        %v961 = vmax.f32 %v916, %v948
        %v962 = vmax.f32 %v917, %v937
        %v963 = vmax.f32 %v918, %v949
        %v964 = vmax.f32 %v919, %v941
        %v965 = vmax.f32 %v920, %v950
        %v966 = vmax.f32 %v921, %v945
        %v967 = vld [vmem:[%s3] sm:$0xf]
        %v968 = vld [vmem:[%s3 + $0x4] sm:$0xf]
        %v969 = vld [vmem:[%s3 + $0x8] sm:$0xf]
        %v970 = vld [vmem:[%s3 + $0xc] sm:$0xf]
        %v971 = vld [vmem:[%s3 + $0x10] sm:$0xf]
        %v972 = vld [vmem:[%s3 + $0x14] sm:$0xf]
        %v973 = vld [vmem:[%s3 + $0x18] sm:$0xf]
        %v974 = vld [vmem:[%s3 + $0x1c] sm:$0xf]
        %v975 = vld [vmem:[%s3 + $0x20] sm:$0xf]
        %v976 = vld [vmem:[%s3 + $0x24] sm:$0xf]
        %v977 = vld [vmem:[%s3 + $0x28] sm:$0xf]
        %v978 = vld [vmem:[%s3 + $0x2c] sm:$0xf]
        %v979 = vld [vmem:[%s3 + $0x30] sm:$0xf]
        %v980 = vld [vmem:[%s3 + $0x34] sm:$0xf]
        %v981 = vld [vmem:[%s3 + $0x38] sm:$0xf]
        %v982 = vld [vmem:[%s3 + $0x3c] sm:$0xf]
        %v983 = vld [vmem:[%s3 + $0x40] sm:$0xf]
        %v984 = vld [vmem:[%s3 + $0x44] sm:$0xf]
        %v985 = vld [vmem:[%s3 + $0x48] sm:$0xf]
        %v986 = vld [vmem:[%s3 + $0x4c] sm:$0xf]
        %v987 = vld [vmem:[%s3 + $0x50] sm:$0x1]
        %v988 = vpack.c.bf16 %v961, %v959
        %v989 = vpack.c.bf16 %v962, %v960
        %v990 = vpack.c.bf16 %v965, %v963
        %v991 = vpack.c.bf16 %v966, %v964
        %v1013 = vunpack.c.l.b16 %v967
        %v1014 = vunpack.c.l.b16 %v968
        %v1015 = vunpack.c.l.b16 %v969
        %v1016 = vunpack.c.l.b16 %v970
        %v1017 = vunpack.c.l.b16 %v971
        %v1018 = vunpack.c.l.b16 %v972
        %v1019 = vunpack.c.l.b16 %v973
        %v1020 = vunpack.c.l.b16 %v974
        %v1021 = vunpack.c.l.b16 %v975
        %v1022 = vunpack.c.l.b16 %v976
        %v1023 = vunpack.c.l.b16 %v977
        %v1024 = vunpack.c.l.b16 %v978
        %v1025 = vunpack.c.l.b16 %v979
        %v1026 = vunpack.c.l.b16 %v980
        %v1027 = vunpack.c.l.b16 %v981
        %v1028 = vunpack.c.l.b16 %v982
        %v1029 = vunpack.c.l.b16 %v983
        %v1030 = vunpack.c.l.b16 %v984
        %v1031 = vunpack.c.l.b16 %v985
        %v1032 = vunpack.c.l.b16 %v986
        %v1033 = vunpack.c.l.b16 %v987
        %v1034 = vpack.c.b16 %v1014, %v1013
        %v1035 = vpack.c.b16 %v1016, %v1015
        %v1036 = vpack.c.b16 %v1018, %v1017
        %v1037 = vpack.c.b16 %v1020, %v1019
        %v1038 = vpack.c.b16 %v1022, %v1021
        %v1039 = vpack.c.b16 %v1024, %v1023
        %v1040 = vpack.c.b16 %v1026, %v1025
        %v1041 = vpack.c.b16 %v1028, %v1027
        %v1042 = vpack.c.b16 %v1030, %v1029
        %v1043 = vpack.c.b16 %v1032, %v1031
        %v1044 = vpack.c.b16 %v1033, %v1033
        %vm1055 = vcmask 277504
        %v1057 = vsel %vm1055, %v989, 0
        %v1060 = vsel %vm1055, %v991, 0
        %vm1062 = vcmask 1040384
        %v1064 = vsel %vm1062, %v1044, 0
        %1066 = vmatpush.bf16.msra.mxu0 %v1041
        %1067 = vmatpush.bf16.msra.mxu0 %v1040
        %1068 = vmatpush.bf16.msra.mxu0 %v1039
        %1069 = vmatpush.bf16.msra.mxu0 %v1038
        %1070 = vmatpush.bf16.msra.mxu0 %v1037
        %1071 = vmatpush.bf16.msra.mxu0 %v1036
        %1072 = vmatpush.bf16.msra.mxu0 %v1035
        %1073 = vmatpush.bf16.msra.mxu0 %v1034
        %1074 = vmatmul.bf16.gmra.mxu0 %v988
        %v1075 = vpop.f32.mrf.mxu0
        %v1076 = vadd.f32 0.0, %v1075
        %v1077 = vpop.f32.mrf.mxu0
        %v1078 = vadd.f32 0.0, %v1077
        %1079 = vmatmul.bf16.gmra.mxu0 %v990
        %v1080 = vpop.f32.mrf.mxu0
        %v1081 = vadd.f32 0.0, %v1080
        %v1082 = vpop.f32.mrf.mxu0
        %v1083 = vadd.f32 0.0, %v1082
        %1084 = vdwg.mxu0
        %1085 = vmatpush.bf16.msra.mxu0 0
        %1086 = vmatpush.bf16.msra.mxu0 0
        %1087 = vmatpush.bf16.msra.mxu0 0
        %1088 = vmatpush.bf16.msra.mxu0 0
        %1089 = vmatpush.bf16.msra.mxu0 0
        %1090 = vmatpush.bf16.msra.mxu0 %v1064
        %1091 = vmatpush.bf16.msra.mxu0 %v1043
        %1092 = vmatpush.bf16.msra.mxu0 %v1042
        %1093 = vmatmul.bf16.gmra.mxu0 %v1057
        %v1094 = vpop.f32.mrf.mxu0
        %v1095 = vadd.f32 %v1076, %v1094
        %v1096 = vpop.f32.mrf.mxu0
        %v1097 = vadd.f32 %v1078, %v1096
        %1098 = vmatmul.bf16.gmra.mxu0 %v1060
        %v1099 = vpop.f32.mrf.mxu0
        %v1100 = vadd.f32 %v1081, %v1099
        %v1101 = vpop.f32.mrf.mxu0
        %v1102 = vadd.f32 %v1083, %v1101
        %1103 = vdwg.mxu0
        %vm1108 = vcmask 1046528
        %v1109 = vrot.slane %v1095, 1
        %v1110 = vrot.slane %v1097, 1
        %v1111 = vsel %vm1108, %v1109, %v1110
        %v1112 = vrot.slane %v1100, 1
        %v1113 = vsel %vm1108, %v1110, %v1112
        %v1114 = vrot.slane %v1102, 1
        %v1115 = vsel %vm1108, %v1112, %v1114
        %v1120 = vmax.f32 %v1095, %v1111
        %v1121 = vmax.f32 %v1097, %v1113
        %v1122 = vmax.f32 %v1100, %v1115
        %v1123 = vmax.f32 %v1102, %v1114
        %v1124 = vld [vmem:[%s4] sm:$0xf]
        %v1125 = vld [vmem:[%s4 + $0x4] sm:$0x7]
        %v1126 = vpack.c.bf16 %v1121, %v1120
        %v1127 = vpack.c.bf16 %v1123, %v1122
        %v1130 = vunpack.c.l.b16 %v1124
        %v1131 = vunpack.c.l.b16 %v1125
        %v1132 = vpack.c.b16 %v1131, %v1130
        %vm1133 = vcmask 220160
        %v1135 = vsel %vm1133, %v1132, 0
        %vm1137 = vcmask 1044480
        %vm1138 = vcmask 1045504
        %v1139 = vsel %vm1137, 4294967295, 65535
        %v1140 = vsel %vm1138, %v1139, 0
        %v1142 = vand.u32 %v1127, %v1140
        %1144 = vmatpush.bf16.msra.mxu0 0
        %1145 = vmatpush.bf16.msra.mxu0 0
        %1146 = vmatpush.bf16.msra.mxu0 0
        %1147 = vmatpush.bf16.msra.mxu0 0
        %1148 = vmatpush.bf16.msra.mxu0 0
        %1149 = vmatpush.bf16.msra.mxu0 0
        %1150 = vmatpush.bf16.msra.mxu0 %v1142
        %1151 = vmatpush.bf16.msra.mxu0 %v1126
        %1152 = vmatmul.bf16.gmra.mxu0 %v1135
        %v1153 = vpop.f32.mrf.mxu0
        %v1154 = vadd.f32 0.0, %v1153
        %v1155 = vpop.f32.mrf.mxu0
        %v1156 = vadd.f32 0.0, %v1155
        %1157 = vdwg.mxu0
        %v1158 = vld [vmem:[%s5] sm:$0xff]
        %v1159 = vld [vmem:[%s5 + $0x8] sm:$0xff]
        %v1160 = vld [vmem:[%s5 + $0x10] sm:$0xff]
        %v1161 = vld [vmem:[%s5 + $0x18] sm:$0xff]
        %v1162 = vld [vmem:[%s5 + $0x20] sm:$0xff]
        %v1163 = vld [vmem:[%s5 + $0x28] sm:$0xff]
        %v1164 = vld [vmem:[%s5 + $0x30] sm:$0xff]
        %v1165 = vld [vmem:[%s5 + $0x38] sm:$0xff]
        %v1166 = vld [vmem:[%s5 + $0x40] sm:$0xff]
        %v1167 = vld [vmem:[%s5 + $0x48] sm:$0xff]
        %v1168 = vld [vmem:[%s5 + $0x50] sm:$0x33]
        %v1169 = vpack.c.bf16 %v1156, %v1154
        %s1170 = scalar_lea.vmem %s5, 88
        %v1171 = vld [vmem:[%s1170] sm:$0xff]
        %v1172 = vld [vmem:[%s1170 + $0x8] sm:$0xff]
        %v1173 = vld [vmem:[%s1170 + $0x10] sm:$0xff]
        %v1174 = vld [vmem:[%s1170 + $0x18] sm:$0xff]
        %v1175 = vld [vmem:[%s1170 + $0x20] sm:$0xff]
        %v1176 = vld [vmem:[%s1170 + $0x28] sm:$0xff]
        %v1177 = vld [vmem:[%s1170 + $0x30] sm:$0xff]
        %v1178 = vld [vmem:[%s1170 + $0x38] sm:$0xff]
        %v1179 = vld [vmem:[%s1170 + $0x40] sm:$0xff]
        %v1180 = vld [vmem:[%s1170 + $0x48] sm:$0xff]
        %v1181 = vld [vmem:[%s1170 + $0x50] sm:$0x33]
        %s1182 = scalar_lea.vmem %s5, 176
        %v1183 = vld [vmem:[%s1182] sm:$0xff]
        %v1184 = vld [vmem:[%s1182 + $0x8] sm:$0xff]
        %v1185 = vld [vmem:[%s1182 + $0x10] sm:$0xff]
        %v1186 = vld [vmem:[%s1182 + $0x18] sm:$0xff]
        %v1187 = vld [vmem:[%s1182 + $0x20] sm:$0xff]
        %v1188 = vld [vmem:[%s1182 + $0x28] sm:$0xff]
        %v1189 = vld [vmem:[%s1182 + $0x30] sm:$0xff]
        %v1190 = vld [vmem:[%s1182 + $0x38] sm:$0xff]
        %v1191 = vld [vmem:[%s1182 + $0x40] sm:$0xff]
        %v1192 = vld [vmem:[%s1182 + $0x48] sm:$0xff]
        %v1193 = vld [vmem:[%s1182 + $0x50] sm:$0x33]
        %v1195 = vrot.slane %v1169, 1
        %v1207 = vunpack.c.l.b16 %v1183
        %v1208 = vunpack.c.h.b16 %v1183
        %v1209 = vunpack.c.l.b16 %v1184
        %v1210 = vunpack.c.h.b16 %v1184
        %v1211 = vunpack.c.l.b16 %v1185
        %v1212 = vunpack.c.h.b16 %v1185
        %v1213 = vunpack.c.l.b16 %v1186
        %v1214 = vunpack.c.h.b16 %v1186
        %v1215 = vunpack.c.l.b16 %v1187
        %v1216 = vunpack.c.h.b16 %v1187
        %v1217 = vunpack.c.l.b16 %v1188
        %v1218 = vunpack.c.h.b16 %v1188
        %v1219 = vunpack.c.l.b16 %v1189
        %v1220 = vunpack.c.h.b16 %v1189
        %v1221 = vunpack.c.l.b16 %v1190
        %v1222 = vunpack.c.h.b16 %v1190
        %v1223 = vunpack.c.l.b16 %v1191
        %v1224 = vunpack.c.h.b16 %v1191
        %v1225 = vunpack.c.l.b16 %v1192
        %v1226 = vunpack.c.h.b16 %v1192
        %v1227 = vunpack.c.l.b16 %v1193
        %v1228 = vunpack.c.h.b16 %v1193
        %v1229 = vpack.c.b16 %v1209, %v1207
        %v1230 = vpack.c.b16 %v1210, %v1208
        %v1231 = vpack.c.b16 %v1213, %v1211
        %v1232 = vpack.c.b16 %v1214, %v1212
        %v1233 = vpack.c.b16 %v1217, %v1215
        %v1234 = vpack.c.b16 %v1218, %v1216
        %v1235 = vpack.c.b16 %v1221, %v1219
        %v1236 = vpack.c.b16 %v1222, %v1220
        %v1237 = vpack.c.b16 %v1225, %v1223
        %v1238 = vpack.c.b16 %v1226, %v1224
        %v1239 = vpack.c.b16 %v1227, %v1227
        %v1240 = vpack.c.b16 %v1228, %v1228
        %vm1251 = vcmask 687104
        %v1253 = vsel %vm1251, %v1195, 0
        %vm1255 = vcmask 1041408
        %v1257 = vsel %vm1255, %v1239, 0
        %v1260 = vsel %vm1255, %v1240, 0
        %1262 = vmatpush.bf16.msra.mxu0 0
        %1263 = vmatpush.bf16.msra.mxu0 0
        %1264 = vmatpush.bf16.msra.mxu0 %v1257
        %1265 = vmatpush.bf16.msra.mxu0 %v1237
        %1266 = vmatpush.bf16.msra.mxu0 %v1235
        %1267 = vmatpush.bf16.msra.mxu0 %v1233
        %1268 = vmatpush.bf16.msra.mxu0 %v1231
        %1269 = vmatpush.bf16.msra.mxu0 %v1229
        %1270 = vmatmul.bf16.gmra.mxu0 %v1253
        %v1271 = vpop.f32.mrf.mxu0
        %v1272 = vadd.f32 0.0, %v1271
        %v1273 = vpop.f32.mrf.mxu0
        %v1274 = vadd.f32 0.0, %v1273
        %1275 = vdwg.mxu0
        %1276 = vmatpush.bf16.msra.mxu0 0
        %1277 = vmatpush.bf16.msra.mxu0 0
        %1278 = vmatpush.bf16.msra.mxu0 %v1260
        %1279 = vmatpush.bf16.msra.mxu0 %v1238
        %1280 = vmatpush.bf16.msra.mxu0 %v1236
        %1281 = vmatpush.bf16.msra.mxu0 %v1234
        %1282 = vmatpush.bf16.msra.mxu0 %v1232
        %1283 = vmatpush.bf16.msra.mxu0 %v1230
        %1284 = vmatmul.bf16.gmra.mxu0 %v1253
        %v1285 = vpop.f32.mrf.mxu0
        %v1286 = vadd.f32 0.0, %v1285
        %v1287 = vpop.f32.mrf.mxu0
        %v1288 = vadd.f32 0.0, %v1287
        %1289 = vdwg.mxu0
        %v1301 = vunpack.c.l.b16 %v1158
        %v1302 = vunpack.c.h.b16 %v1158
        %v1303 = vunpack.c.l.b16 %v1159
        %v1304 = vunpack.c.h.b16 %v1159
        %v1305 = vunpack.c.l.b16 %v1160
        %v1306 = vunpack.c.h.b16 %v1160
        %v1307 = vunpack.c.l.b16 %v1161
        %v1308 = vunpack.c.h.b16 %v1161
        %v1309 = vunpack.c.l.b16 %v1162
        %v1310 = vunpack.c.h.b16 %v1162
        %v1311 = vunpack.c.l.b16 %v1163
        %v1312 = vunpack.c.h.b16 %v1163
        %v1313 = vunpack.c.l.b16 %v1164
        %v1314 = vunpack.c.h.b16 %v1164
        %v1315 = vunpack.c.l.b16 %v1165
        %v1316 = vunpack.c.h.b16 %v1165
        %v1317 = vunpack.c.l.b16 %v1166
        %v1318 = vunpack.c.h.b16 %v1166
        %v1319 = vunpack.c.l.b16 %v1167
        %v1320 = vunpack.c.h.b16 %v1167
        %v1321 = vunpack.c.l.b16 %v1168
        %v1322 = vunpack.c.h.b16 %v1168
        %v1323 = vpack.c.b16 %v1303, %v1301
        %v1324 = vpack.c.b16 %v1304, %v1302
        %v1325 = vpack.c.b16 %v1307, %v1305
        %v1326 = vpack.c.b16 %v1308, %v1306
        %v1327 = vpack.c.b16 %v1311, %v1309
        %v1328 = vpack.c.b16 %v1312, %v1310
        %v1329 = vpack.c.b16 %v1315, %v1313
        %v1330 = vpack.c.b16 %v1316, %v1314
        %v1331 = vpack.c.b16 %v1319, %v1317
        %v1332 = vpack.c.b16 %v1320, %v1318
        %v1333 = vpack.c.b16 %v1321, %v1321
        %v1334 = vpack.c.b16 %v1322, %v1322
        %v1346 = vsel %vm1251, %v1169, 0
        %v1349 = vsel %vm1255, %v1333, 0
        %v1352 = vsel %vm1255, %v1334, 0
        %1354 = vmatpush.bf16.msra.mxu0 0
        %1355 = vmatpush.bf16.msra.mxu0 0
        %1356 = vmatpush.bf16.msra.mxu0 %v1349
        %1357 = vmatpush.bf16.msra.mxu0 %v1331
        %1358 = vmatpush.bf16.msra.mxu0 %v1329
        %1359 = vmatpush.bf16.msra.mxu0 %v1327
        %1360 = vmatpush.bf16.msra.mxu0 %v1325
        %1361 = vmatpush.bf16.msra.mxu0 %v1323
        %1362 = vmatmul.bf16.gmra.mxu0 %v1346
        %v1363 = vpop.f32.mrf.mxu0
        %v1364 = vadd.f32 %v1272, %v1363
        %v1365 = vpop.f32.mrf.mxu0
        %v1366 = vadd.f32 %v1274, %v1365
        %1367 = vdwg.mxu0
        %1368 = vmatpush.bf16.msra.mxu0 0
        %1369 = vmatpush.bf16.msra.mxu0 0
        %1370 = vmatpush.bf16.msra.mxu0 %v1352
        %1371 = vmatpush.bf16.msra.mxu0 %v1332
        %1372 = vmatpush.bf16.msra.mxu0 %v1330
        %1373 = vmatpush.bf16.msra.mxu0 %v1328
        %1374 = vmatpush.bf16.msra.mxu0 %v1326
        %1375 = vmatpush.bf16.msra.mxu0 %v1324
        %1376 = vmatmul.bf16.gmra.mxu0 %v1346
        %v1377 = vpop.f32.mrf.mxu0
        %v1378 = vadd.f32 %v1286, %v1377
        %v1379 = vpop.f32.mrf.mxu0
        %v1380 = vadd.f32 %v1288, %v1379
        %1381 = vdwg.mxu0
        %s1382 = scalar_lea.vmem %s5, 264
        %v1383 = vld [vmem:[%s1382] sm:$0xff]
        %v1384 = vld [vmem:[%s1382 + $0x8] sm:$0xff]
        %v1385 = vld [vmem:[%s1382 + $0x10] sm:$0xff]
        %v1386 = vld [vmem:[%s1382 + $0x18] sm:$0xff]
        %v1387 = vld [vmem:[%s1382 + $0x20] sm:$0xff]
        %v1388 = vld [vmem:[%s1382 + $0x28] sm:$0xff]
        %v1389 = vld [vmem:[%s1382 + $0x30] sm:$0xff]
        %v1390 = vld [vmem:[%s1382 + $0x38] sm:$0xff]
        %v1391 = vld [vmem:[%s1382 + $0x40] sm:$0xff]
        %v1392 = vld [vmem:[%s1382 + $0x48] sm:$0xff]
        %v1393 = vld [vmem:[%s1382 + $0x50] sm:$0x33]
        %v1394 = vshrl.u32 %v1169, 16
        %v1396 = vrot.slane %v1394, 1
        %v1397 = vshll.u32 %v1169, 16
        %v1399 = vrot.slane %v1397, 2
        %v1400 = vor.u32 %v1396, %v1399
        %v1412 = vunpack.c.l.b16 %v1383
        %v1413 = vunpack.c.h.b16 %v1383
        %v1414 = vunpack.c.l.b16 %v1384
        %v1415 = vunpack.c.h.b16 %v1384
        %v1416 = vunpack.c.l.b16 %v1385
        %v1417 = vunpack.c.h.b16 %v1385
        %v1418 = vunpack.c.l.b16 %v1386
        %v1419 = vunpack.c.h.b16 %v1386
        %v1420 = vunpack.c.l.b16 %v1387
        %v1421 = vunpack.c.h.b16 %v1387
        %v1422 = vunpack.c.l.b16 %v1388
        %v1423 = vunpack.c.h.b16 %v1388
        %v1424 = vunpack.c.l.b16 %v1389
        %v1425 = vunpack.c.h.b16 %v1389
        %v1426 = vunpack.c.l.b16 %v1390
        %v1427 = vunpack.c.h.b16 %v1390
        %v1428 = vunpack.c.l.b16 %v1391
        %v1429 = vunpack.c.h.b16 %v1391
        %v1430 = vunpack.c.l.b16 %v1392
        %v1431 = vunpack.c.h.b16 %v1392
        %v1432 = vunpack.c.l.b16 %v1393
        %v1433 = vunpack.c.h.b16 %v1393
        %v1434 = vpack.c.b16 %v1414, %v1412
        %v1435 = vpack.c.b16 %v1415, %v1413
        %v1436 = vpack.c.b16 %v1418, %v1416
        %v1437 = vpack.c.b16 %v1419, %v1417
        %v1438 = vpack.c.b16 %v1422, %v1420
        %v1439 = vpack.c.b16 %v1423, %v1421
        %v1440 = vpack.c.b16 %v1426, %v1424
        %v1441 = vpack.c.b16 %v1427, %v1425
        %v1442 = vpack.c.b16 %v1430, %v1428
        %v1443 = vpack.c.b16 %v1431, %v1429
        %v1444 = vpack.c.b16 %v1432, %v1432
        %v1445 = vpack.c.b16 %v1433, %v1433
        %v1457 = vsel %vm1251, %v1400, 0
        %v1460 = vsel %vm1255, %v1444, 0
        %v1463 = vsel %vm1255, %v1445, 0
        %1465 = vmatpush.bf16.msra.mxu0 0
        %1466 = vmatpush.bf16.msra.mxu0 0
        %1467 = vmatpush.bf16.msra.mxu0 %v1460
        %1468 = vmatpush.bf16.msra.mxu0 %v1442
        %1469 = vmatpush.bf16.msra.mxu0 %v1440
        %1470 = vmatpush.bf16.msra.mxu0 %v1438
        %1471 = vmatpush.bf16.msra.mxu0 %v1436
        %1472 = vmatpush.bf16.msra.mxu0 %v1434
        %1473 = vmatmul.bf16.gmra.mxu0 %v1457
        %v1474 = vpop.f32.mrf.mxu0
        %v1475 = vadd.f32 0.0, %v1474
        %v1476 = vpop.f32.mrf.mxu0
        %v1477 = vadd.f32 0.0, %v1476
        %1478 = vdwg.mxu0
        %1479 = vmatpush.bf16.msra.mxu0 0
        %1480 = vmatpush.bf16.msra.mxu0 0
        %1481 = vmatpush.bf16.msra.mxu0 %v1463
        %1482 = vmatpush.bf16.msra.mxu0 %v1443
        %1483 = vmatpush.bf16.msra.mxu0 %v1441
        %1484 = vmatpush.bf16.msra.mxu0 %v1439
        %1485 = vmatpush.bf16.msra.mxu0 %v1437
        %1486 = vmatpush.bf16.msra.mxu0 %v1435
        %1487 = vmatmul.bf16.gmra.mxu0 %v1457
        %v1488 = vpop.f32.mrf.mxu0
        %v1489 = vadd.f32 0.0, %v1488
        %v1490 = vpop.f32.mrf.mxu0
        %v1491 = vadd.f32 0.0, %v1490
        %1492 = vdwg.mxu0
        %v1493 = vrot.slane %v1397, 1
        %v1494 = vor.u32 %v1394, %v1493
        %v1506 = vunpack.c.l.b16 %v1171
        %v1507 = vunpack.c.h.b16 %v1171
        %v1508 = vunpack.c.l.b16 %v1172
        %v1509 = vunpack.c.h.b16 %v1172
        %v1510 = vunpack.c.l.b16 %v1173
        %v1511 = vunpack.c.h.b16 %v1173
        %v1512 = vunpack.c.l.b16 %v1174
        %v1513 = vunpack.c.h.b16 %v1174
        %v1514 = vunpack.c.l.b16 %v1175
        %v1515 = vunpack.c.h.b16 %v1175
        %v1516 = vunpack.c.l.b16 %v1176
        %v1517 = vunpack.c.h.b16 %v1176
        %v1518 = vunpack.c.l.b16 %v1177
        %v1519 = vunpack.c.h.b16 %v1177
        %v1520 = vunpack.c.l.b16 %v1178
        %v1521 = vunpack.c.h.b16 %v1178
        %v1522 = vunpack.c.l.b16 %v1179
        %v1523 = vunpack.c.h.b16 %v1179
        %v1524 = vunpack.c.l.b16 %v1180
        %v1525 = vunpack.c.h.b16 %v1180
        %v1526 = vunpack.c.l.b16 %v1181
        %v1527 = vunpack.c.h.b16 %v1181
        %v1528 = vpack.c.b16 %v1508, %v1506
        %v1529 = vpack.c.b16 %v1509, %v1507
        %v1530 = vpack.c.b16 %v1512, %v1510
        %v1531 = vpack.c.b16 %v1513, %v1511
        %v1532 = vpack.c.b16 %v1516, %v1514
        %v1533 = vpack.c.b16 %v1517, %v1515
        %v1534 = vpack.c.b16 %v1520, %v1518
        %v1535 = vpack.c.b16 %v1521, %v1519
        %v1536 = vpack.c.b16 %v1524, %v1522
        %v1537 = vpack.c.b16 %v1525, %v1523
        %v1538 = vpack.c.b16 %v1526, %v1526
        %v1539 = vpack.c.b16 %v1527, %v1527
        %v1551 = vsel %vm1251, %v1494, 0
        %v1554 = vsel %vm1255, %v1538, 0
        %v1557 = vsel %vm1255, %v1539, 0
        %1559 = vmatpush.bf16.msra.mxu0 0
        %1560 = vmatpush.bf16.msra.mxu0 0
        %1561 = vmatpush.bf16.msra.mxu0 %v1554
        %1562 = vmatpush.bf16.msra.mxu0 %v1536
        %1563 = vmatpush.bf16.msra.mxu0 %v1534
        %1564 = vmatpush.bf16.msra.mxu0 %v1532
        %1565 = vmatpush.bf16.msra.mxu0 %v1530
        %1566 = vmatpush.bf16.msra.mxu0 %v1528
        %1567 = vmatmul.bf16.gmra.mxu0 %v1551
        %v1568 = vpop.f32.mrf.mxu0
        %v1569 = vadd.f32 %v1475, %v1568
        %v1570 = vpop.f32.mrf.mxu0
        %v1571 = vadd.f32 %v1477, %v1570
        %1572 = vdwg.mxu0
        %1573 = vmatpush.bf16.msra.mxu0 0
        %1574 = vmatpush.bf16.msra.mxu0 0
        %1575 = vmatpush.bf16.msra.mxu0 %v1557
        %1576 = vmatpush.bf16.msra.mxu0 %v1537
        %1577 = vmatpush.bf16.msra.mxu0 %v1535
        %1578 = vmatpush.bf16.msra.mxu0 %v1533
        %1579 = vmatpush.bf16.msra.mxu0 %v1531
        %1580 = vmatpush.bf16.msra.mxu0 %v1529
        %1581 = vmatmul.bf16.gmra.mxu0 %v1551
        %v1582 = vpop.f32.mrf.mxu0
        %v1583 = vadd.f32 %v1489, %v1582
        %v1584 = vpop.f32.mrf.mxu0
        %v1585 = vadd.f32 %v1491, %v1584
        %1586 = vdwg.mxu0
        %s1587 = scalar_lea.vmem %s5, 352
        %v1588 = vld [vmem:[%s1587] sm:$0xff]
        %v1589 = vld [vmem:[%s1587 + $0x8] sm:$0xff]
        %v1590 = vld [vmem:[%s1587 + $0x10] sm:$0xff]
        %v1591 = vld [vmem:[%s1587 + $0x18] sm:$0xff]
        %v1592 = vld [vmem:[%s1587 + $0x20] sm:$0xff]
        %v1593 = vld [vmem:[%s1587 + $0x28] sm:$0xff]
        %v1594 = vld [vmem:[%s1587 + $0x30] sm:$0xff]
        %v1595 = vld [vmem:[%s1587 + $0x38] sm:$0xff]
        %v1596 = vld [vmem:[%s1587 + $0x40] sm:$0xff]
        %v1597 = vld [vmem:[%s1587 + $0x48] sm:$0xff]
        %v1598 = vld [vmem:[%s1587 + $0x50] sm:$0x33]
        %v1599 = vrot.slane %v1169, 2
        %v1611 = vunpack.c.l.b16 %v1588
        %v1612 = vunpack.c.h.b16 %v1588
        %v1613 = vunpack.c.l.b16 %v1589
        %v1614 = vunpack.c.h.b16 %v1589
        %v1615 = vunpack.c.l.b16 %v1590
        %v1616 = vunpack.c.h.b16 %v1590
        %v1617 = vunpack.c.l.b16 %v1591
        %v1618 = vunpack.c.h.b16 %v1591
        %v1619 = vunpack.c.l.b16 %v1592
        %v1620 = vunpack.c.h.b16 %v1592
        %v1621 = vunpack.c.l.b16 %v1593
        %v1622 = vunpack.c.h.b16 %v1593
        %v1623 = vunpack.c.l.b16 %v1594
        %v1624 = vunpack.c.h.b16 %v1594
        %v1625 = vunpack.c.l.b16 %v1595
        %v1626 = vunpack.c.h.b16 %v1595
        %v1627 = vunpack.c.l.b16 %v1596
        %v1628 = vunpack.c.h.b16 %v1596
        %v1629 = vunpack.c.l.b16 %v1597
        %v1630 = vunpack.c.h.b16 %v1597
        %v1631 = vunpack.c.l.b16 %v1598
        %v1632 = vunpack.c.h.b16 %v1598
        %v1633 = vpack.c.b16 %v1613, %v1611
        %v1634 = vpack.c.b16 %v1614, %v1612
        %v1635 = vpack.c.b16 %v1617, %v1615
        %v1636 = vpack.c.b16 %v1618, %v1616
        %v1637 = vpack.c.b16 %v1621, %v1619
        %v1638 = vpack.c.b16 %v1622, %v1620
        %v1639 = vpack.c.b16 %v1625, %v1623
        %v1640 = vpack.c.b16 %v1626, %v1624
        %v1641 = vpack.c.b16 %v1629, %v1627
        %v1642 = vpack.c.b16 %v1630, %v1628
        %v1643 = vpack.c.b16 %v1631, %v1631
        %v1644 = vpack.c.b16 %v1632, %v1632
        %v1656 = vsel %vm1251, %v1599, 0
        %v1659 = vsel %vm1255, %v1643, 0
        %v1662 = vsel %vm1255, %v1644, 0
        %1664 = vmatpush.bf16.msra.mxu0 0
        %1665 = vmatpush.bf16.msra.mxu0 0
        %1666 = vmatpush.bf16.msra.mxu0 %v1659
        %1667 = vmatpush.bf16.msra.mxu0 %v1641
        %1668 = vmatpush.bf16.msra.mxu0 %v1639
        %1669 = vmatpush.bf16.msra.mxu0 %v1637
        %1670 = vmatpush.bf16.msra.mxu0 %v1635
        %1671 = vmatpush.bf16.msra.mxu0 %v1633
        %1672 = vmatmul.bf16.gmra.mxu0 %v1656
        %v1673 = vpop.f32.mrf.mxu0
        %v1674 = vadd.f32 0.0, %v1673
        %v1675 = vpop.f32.mrf.mxu0
        %v1676 = vadd.f32 0.0, %v1675
        %1677 = vdwg.mxu0
        %1678 = vmatpush.bf16.msra.mxu0 0
        %1679 = vmatpush.bf16.msra.mxu0 0
        %1680 = vmatpush.bf16.msra.mxu0 %v1662
        %1681 = vmatpush.bf16.msra.mxu0 %v1642
        %1682 = vmatpush.bf16.msra.mxu0 %v1640
        %1683 = vmatpush.bf16.msra.mxu0 %v1638
        %1684 = vmatpush.bf16.msra.mxu0 %v1636
        %1685 = vmatpush.bf16.msra.mxu0 %v1634
        %1686 = vmatmul.bf16.gmra.mxu0 %v1656
        %v1687 = vpop.f32.mrf.mxu0
        %v1688 = vadd.f32 0.0, %v1687
        %v1689 = vpop.f32.mrf.mxu0
        %v1690 = vadd.f32 0.0, %v1689
        %1691 = vdwg.mxu0
        %v1692 = vadd.f32 %v1364, %v1674
        %v1693 = vadd.f32 %v1378, %v1688
        %v1694 = vadd.f32 %v1366, %v1676
        %v1695 = vadd.f32 %v1380, %v1690
        %v1696 = vadd.f32 %v1692, %v1569
        %v1697 = vadd.f32 %v1693, %v1583
        %v1698 = vadd.f32 %v1694, %v1571
        %v1699 = vadd.f32 %v1695, %v1585
        %v1700 = vld [vmem:[%s6] sm:$0x3]
        %v1702 = vperm.slane %v1700, 0
        %v1703 = vperm.slane %v1700, 1
        %v1706 = vadd.f32 %v1696, %v1702
        %v1707 = vadd.f32 %v1697, %v1703
        %v1708 = vadd.f32 %v1698, %v1702
        %v1709 = vadd.f32 %v1699, %v1703
        %v1710 = vtanh.pop %v1706
        %v1711 = vtanh.pop %v1707
        %v1712 = vtanh.pop %v1708
        %v1713 = vtanh.pop %v1709
        %v1714 = vmul.f32 %v1710, 1.7159
        %v1715 = vmul.f32 %v1711, 1.7159
        %v1716 = vmul.f32 %v1712, 1.7159
        %v1717 = vmul.f32 %v1713, 1.7159
        %1722 = vrot.lane.b32.xlu0 %v1714, 112
        %v1723 = vpop.permute.xlu0 %1722
        %1724 = vrot.lane.b32.xlu0 %v1715, 112
        %v1725 = vpop.permute.xlu0 %1724
        %1726 = vrot.lane.b32.xlu0 %v1716, 112
        %v1727 = vpop.permute.xlu0 %1726
        %1728 = vrot.lane.b32.xlu0 %v1717, 112
        %v1729 = vpop.permute.xlu0 %1728
        %vm1730 = vcmask 916480
        %v1731 = vsel %vm1730, %v1723, %v1725
        %v1732 = vsel %vm1730, %v1727, %v1729
        %v1737 = vmax.f32 %v1714, %v1731
        %v1738 = vmax.f32 %v1715, %v1725
        %v1739 = vmax.f32 %v1716, %v1732
        %v1740 = vmax.f32 %v1717, %v1729
        %v1741 = vld [vmem:[%s7] sm:$0xf]
        %v1742 = vld [vmem:[%s7 + $0x4] sm:$0xf]
        %v1743 = vld [vmem:[%s7 + $0x8] sm:$0xf]
        %v1744 = vld [vmem:[%s7 + $0xc] sm:$0xf]
        %v1745 = vld [vmem:[%s7 + $0x10] sm:$0xf]
        %v1746 = vld [vmem:[%s7 + $0x14] sm:$0xf]
        %v1747 = vld [vmem:[%s7 + $0x18] sm:$0xf]
        %v1748 = vld [vmem:[%s7 + $0x1c] sm:$0xf]
        %v1749 = vld [vmem:[%s7 + $0x20] sm:$0xf]
        %v1750 = vld [vmem:[%s7 + $0x24] sm:$0xf]
        %v1751 = vld [vmem:[%s7 + $0x28] sm:$0xf]
        %v1752 = vld [vmem:[%s7 + $0x2c] sm:$0xf]
        %v1753 = vld [vmem:[%s7 + $0x30] sm:$0xf]
        %v1754 = vld [vmem:[%s7 + $0x34] sm:$0xf]
        %v1755 = vld [vmem:[%s7 + $0x38] sm:$0xf]
        %v1756 = vld [vmem:[%s7 + $0x3c] sm:$0xf]
        %v1757 = vld [vmem:[%s7 + $0x40] sm:$0xf]
        %v1758 = vld [vmem:[%s7 + $0x44] sm:$0xf]
        %v1759 = vpack.c.bf16 %v1739, %v1737
        %v1760 = vpack.c.bf16 %v1740, %v1738
        %v1779 = vunpack.c.l.b16 %v1741
        %v1780 = vunpack.c.l.b16 %v1742
        %v1781 = vunpack.c.l.b16 %v1743
        %v1782 = vunpack.c.l.b16 %v1744
        %v1783 = vunpack.c.l.b16 %v1745
        %v1784 = vunpack.c.l.b16 %v1746
        %v1785 = vunpack.c.l.b16 %v1747
        %v1786 = vunpack.c.l.b16 %v1748
        %v1787 = vunpack.c.l.b16 %v1749
        %v1788 = vunpack.c.l.b16 %v1750
        %v1789 = vunpack.c.l.b16 %v1751
        %v1790 = vunpack.c.l.b16 %v1752
        %v1791 = vunpack.c.l.b16 %v1753
        %v1792 = vunpack.c.l.b16 %v1754
        %v1793 = vunpack.c.l.b16 %v1755
        %v1794 = vunpack.c.l.b16 %v1756
        %v1795 = vunpack.c.l.b16 %v1757
        %v1796 = vunpack.c.l.b16 %v1758
        %v1797 = vpack.c.b16 %v1780, %v1779
        %v1798 = vpack.c.b16 %v1782, %v1781
        %v1799 = vpack.c.b16 %v1784, %v1783
        %v1800 = vpack.c.b16 %v1786, %v1785
        %v1801 = vpack.c.b16 %v1788, %v1787
        %v1802 = vpack.c.b16 %v1790, %v1789
        %v1803 = vpack.c.b16 %v1792, %v1791
        %v1804 = vpack.c.b16 %v1794, %v1793
        %v1805 = vpack.c.b16 %v1796, %v1795
        %vm1815 = vcmask 130048
        %v1817 = vsel %vm1815, %v1760, 0
        %1819 = vmatpush.bf16.msra.mxu0 %v1804
        %1820 = vmatpush.bf16.msra.mxu0 %v1803
        %1821 = vmatpush.bf16.msra.mxu0 %v1802
        %1822 = vmatpush.bf16.msra.mxu0 %v1801
        %1823 = vmatpush.bf16.msra.mxu0 %v1800
        %1824 = vmatpush.bf16.msra.mxu0 %v1799
        %1825 = vmatpush.bf16.msra.mxu0 %v1798
        %1826 = vmatpush.bf16.msra.mxu0 %v1797
        %1827 = vmatmul.bf16.gmra.mxu0 %v1759
        %v1828 = vpop.f32.mrf.mxu0
        %v1829 = vadd.f32 0.0, %v1828
        %v1830 = vpop.f32.mrf.mxu0
        %v1831 = vadd.f32 0.0, %v1830
        %1832 = vdwg.mxu0
        %1833 = vmatpush.bf16.msra.mxu0 0
        %1834 = vmatpush.bf16.msra.mxu0 0
        %1835 = vmatpush.bf16.msra.mxu0 0
        %1836 = vmatpush.bf16.msra.mxu0 0
        %1837 = vmatpush.bf16.msra.mxu0 0
        %1838 = vmatpush.bf16.msra.mxu0 0
        %1839 = vmatpush.bf16.msra.mxu0 0
        %1840 = vmatpush.bf16.msra.mxu0 %v1805
        %1841 = vmatmul.bf16.gmra.mxu0 %v1817
        %v1842 = vpop.f32.mrf.mxu0
        %v1843 = vadd.f32 %v1829, %v1842
        %v1844 = vpop.f32.mrf.mxu0
        %v1845 = vadd.f32 %v1831, %v1844
        %1846 = vdwg.mxu0
        %v1849 = vrot.slane %v1843, 1
        %v1850 = vrot.slane %v1845, 1
        %v1851 = vsel %vm1108, %v1849, %v1850
        %v1854 = vmax.f32 %v1843, %v1851
        %v1855 = vmax.f32 %v1845, %v1850
        %v1856 = vld [vmem:[%s8] sm:$0x7]
        %v1857 = vpack.c.bf16 %v1855, %v1854
        %vm1858 = vcmask 72704
        %v1860 = vsel %vm1858, %v1856, 0
        %vm1862 = vcmask 1043456
        %v1863 = vsel %vm1862, 4294967295, 65535
        %v1864 = vsel %vm1137, %v1863, 0
        %v1866 = vand.u32 %v1857, %v1864
        %1868 = vmatpush.bf16.msra.mxu0 0
        %1869 = vmatpush.bf16.msra.mxu0 0
        %1870 = vmatpush.bf16.msra.mxu0 0
        %1871 = vmatpush.bf16.msra.mxu0 0
        %1872 = vmatpush.bf16.msra.mxu0 0
        %1873 = vmatpush.bf16.msra.mxu0 0
        %1874 = vmatpush.bf16.msra.mxu0 0
        %1875 = vmatpush.bf16.msra.mxu0 %v1866
        %1876 = vmatmul.bf16.gmra.mxu0 %v1860
        %v1877 = vpop.f32.mrf.mxu0
        %v1878 = vadd.f32 0.0, %v1877
        %v1879 = vpop.f32.mrf.mxu0
        %1880 = vdwg.mxu0
        %v1881 = vld [vmem:[%s9] sm:$0xf]
        %v1882 = vld [vmem:[%s9 + $0x4] sm:$0xf]
        %v1883 = vld [vmem:[%s9 + $0x8] sm:$0xf]
        %v1884 = vld [vmem:[%s9 + $0xc] sm:$0xf]
        %v1885 = vld [vmem:[%s9 + $0x10] sm:$0xf]
        %v1886 = vld [vmem:[%s9 + $0x14] sm:$0xf]
        %v1887 = vld [vmem:[%s9 + $0x18] sm:$0xf]
        %v1888 = vld [vmem:[%s9 + $0x1c] sm:$0xf]
        %v1889 = vld [vmem:[%s9 + $0x20] sm:$0xf]
        %v1890 = vld [vmem:[%s9 + $0x24] sm:$0xf]
        %v1891 = vpack.c.bf16 %v1878, %v1878
        %s1892 = scalar_lea.vmem %s9, 40
        %v1893 = vld [vmem:[%s1892] sm:$0xf]
        %v1894 = vld [vmem:[%s1892 + $0x4] sm:$0xf]
        %v1895 = vld [vmem:[%s1892 + $0x8] sm:$0xf]
        %v1896 = vld [vmem:[%s1892 + $0xc] sm:$0xf]
        %v1897 = vld [vmem:[%s1892 + $0x10] sm:$0xf]
        %v1898 = vld [vmem:[%s1892 + $0x14] sm:$0xf]
        %v1899 = vld [vmem:[%s1892 + $0x18] sm:$0xf]
        %v1900 = vld [vmem:[%s1892 + $0x1c] sm:$0xf]
        %v1901 = vld [vmem:[%s1892 + $0x20] sm:$0xf]
        %v1902 = vld [vmem:[%s1892 + $0x24] sm:$0xf]
        %s1903 = scalar_lea.vmem %s9, 80
        %v1904 = vld [vmem:[%s1903] sm:$0xf]
        %v1905 = vld [vmem:[%s1903 + $0x4] sm:$0xf]
        %v1906 = vld [vmem:[%s1903 + $0x8] sm:$0xf]
        %v1907 = vld [vmem:[%s1903 + $0xc] sm:$0xf]
        %v1908 = vld [vmem:[%s1903 + $0x10] sm:$0xf]
        %v1909 = vld [vmem:[%s1903 + $0x14] sm:$0xf]
        %v1910 = vld [vmem:[%s1903 + $0x18] sm:$0xf]
        %v1911 = vld [vmem:[%s1903 + $0x1c] sm:$0xf]
        %v1912 = vld [vmem:[%s1903 + $0x20] sm:$0xf]
        %v1913 = vld [vmem:[%s1903 + $0x24] sm:$0xf]
        %v1915 = vrot.slane %v1891, 1
        %v1926 = vunpack.c.l.b16 %v1904
        %v1927 = vunpack.c.l.b16 %v1905
        %v1928 = vunpack.c.l.b16 %v1906
        %v1929 = vunpack.c.l.b16 %v1907
        %v1930 = vunpack.c.l.b16 %v1908
        %v1931 = vunpack.c.l.b16 %v1909
        %v1932 = vunpack.c.l.b16 %v1910
        %v1933 = vunpack.c.l.b16 %v1911
        %v1934 = vunpack.c.l.b16 %v1912
        %v1935 = vunpack.c.l.b16 %v1913
        %v1936 = vpack.c.b16 %v1927, %v1926
        %v1937 = vpack.c.b16 %v1929, %v1928
        %v1938 = vpack.c.b16 %v1931, %v1930
        %v1939 = vpack.c.b16 %v1933, %v1932
        %v1940 = vpack.c.b16 %v1935, %v1934
        %vm1946 = vcmask 654336
        %v1948 = vsel %vm1946, %v1915, 0
        %1950 = vmatpush.bf16.msra.mxu0 0
        %1951 = vmatpush.bf16.msra.mxu0 0
        %1952 = vmatpush.bf16.msra.mxu0 0
        %1953 = vmatpush.bf16.msra.mxu0 %v1940
        %1954 = vmatpush.bf16.msra.mxu0 %v1939
        %1955 = vmatpush.bf16.msra.mxu0 %v1938
        %1956 = vmatpush.bf16.msra.mxu0 %v1937
        %1957 = vmatpush.bf16.msra.mxu0 %v1936
        %1958 = vmatmul.bf16.gmra.mxu0 %v1948
        %v1959 = vpop.f32.mrf.mxu0
        %v1960 = vadd.f32 0.0, %v1959
        %v1961 = vpop.f32.mrf.mxu0
        %1962 = vdwg.mxu0
        %v1973 = vunpack.c.l.b16 %v1881
        %v1974 = vunpack.c.l.b16 %v1882
        %v1975 = vunpack.c.l.b16 %v1883
        %v1976 = vunpack.c.l.b16 %v1884
        %v1977 = vunpack.c.l.b16 %v1885
        %v1978 = vunpack.c.l.b16 %v1886
        %v1979 = vunpack.c.l.b16 %v1887
        %v1980 = vunpack.c.l.b16 %v1888
        %v1981 = vunpack.c.l.b16 %v1889
        %v1982 = vunpack.c.l.b16 %v1890
        %v1983 = vpack.c.b16 %v1974, %v1973
        %v1984 = vpack.c.b16 %v1976, %v1975
        %v1985 = vpack.c.b16 %v1978, %v1977
        %v1986 = vpack.c.b16 %v1980, %v1979
        %v1987 = vpack.c.b16 %v1982, %v1981
        %v1994 = vsel %vm1946, %v1891, 0
        %1996 = vmatpush.bf16.msra.mxu0 0
        %1997 = vmatpush.bf16.msra.mxu0 0
        %1998 = vmatpush.bf16.msra.mxu0 0
        %1999 = vmatpush.bf16.msra.mxu0 %v1987
        %2000 = vmatpush.bf16.msra.mxu0 %v1986
        %2001 = vmatpush.bf16.msra.mxu0 %v1985
        %2002 = vmatpush.bf16.msra.mxu0 %v1984
        %2003 = vmatpush.bf16.msra.mxu0 %v1983
        %2004 = vmatmul.bf16.gmra.mxu0 %v1994
        %v2005 = vpop.f32.mrf.mxu0
        %v2006 = vadd.f32 %v1960, %v2005
        %v2007 = vpop.f32.mrf.mxu0
        %2008 = vdwg.mxu0
        %s2009 = scalar_lea.vmem %s9, 120
        %v2010 = vld [vmem:[%s2009] sm:$0xf]
        %v2011 = vld [vmem:[%s2009 + $0x4] sm:$0xf]
        %v2012 = vld [vmem:[%s2009 + $0x8] sm:$0xf]
        %v2013 = vld [vmem:[%s2009 + $0xc] sm:$0xf]
        %v2014 = vld [vmem:[%s2009 + $0x10] sm:$0xf]
        %v2015 = vld [vmem:[%s2009 + $0x14] sm:$0xf]
        %v2016 = vld [vmem:[%s2009 + $0x18] sm:$0xf]
        %v2017 = vld [vmem:[%s2009 + $0x1c] sm:$0xf]
        %v2018 = vld [vmem:[%s2009 + $0x20] sm:$0xf]
        %v2019 = vld [vmem:[%s2009 + $0x24] sm:$0xf]
        %v2020 = vshrl.u32 %v1891, 16
        %v2022 = vrot.slane %v2020, 1
        %v2033 = vunpack.c.l.b16 %v2010
        %v2034 = vunpack.c.l.b16 %v2011
        %v2035 = vunpack.c.l.b16 %v2012
        %v2036 = vunpack.c.l.b16 %v2013
        %v2037 = vunpack.c.l.b16 %v2014
        %v2038 = vunpack.c.l.b16 %v2015
        %v2039 = vunpack.c.l.b16 %v2016
        %v2040 = vunpack.c.l.b16 %v2017
        %v2041 = vunpack.c.l.b16 %v2018
        %v2042 = vunpack.c.l.b16 %v2019
        %v2043 = vpack.c.b16 %v2034, %v2033
        %v2044 = vpack.c.b16 %v2036, %v2035
        %v2045 = vpack.c.b16 %v2038, %v2037
        %v2046 = vpack.c.b16 %v2040, %v2039
        %v2047 = vpack.c.b16 %v2042, %v2041
        %v2054 = vsel %vm1946, %v2022, 0
        %2056 = vmatpush.bf16.msra.mxu0 0
        %2057 = vmatpush.bf16.msra.mxu0 0
        %2058 = vmatpush.bf16.msra.mxu0 0
        %2059 = vmatpush.bf16.msra.mxu0 %v2047
        %2060 = vmatpush.bf16.msra.mxu0 %v2046
        %2061 = vmatpush.bf16.msra.mxu0 %v2045
        %2062 = vmatpush.bf16.msra.mxu0 %v2044
        %2063 = vmatpush.bf16.msra.mxu0 %v2043
        %2064 = vmatmul.bf16.gmra.mxu0 %v2054
        %v2065 = vpop.f32.mrf.mxu0
        %v2066 = vadd.f32 0.0, %v2065
        %v2067 = vpop.f32.mrf.mxu0
        %2068 = vdwg.mxu0
        %v2079 = vunpack.c.l.b16 %v1893
        %v2080 = vunpack.c.l.b16 %v1894
        %v2081 = vunpack.c.l.b16 %v1895
        %v2082 = vunpack.c.l.b16 %v1896
        %v2083 = vunpack.c.l.b16 %v1897
        %v2084 = vunpack.c.l.b16 %v1898
        %v2085 = vunpack.c.l.b16 %v1899
        %v2086 = vunpack.c.l.b16 %v1900
        %v2087 = vunpack.c.l.b16 %v1901
        %v2088 = vunpack.c.l.b16 %v1902
        %v2089 = vpack.c.b16 %v2080, %v2079
        %v2090 = vpack.c.b16 %v2082, %v2081
        %v2091 = vpack.c.b16 %v2084, %v2083
        %v2092 = vpack.c.b16 %v2086, %v2085
        %v2093 = vpack.c.b16 %v2088, %v2087
        %v2100 = vsel %vm1946, %v2020, 0
        %2102 = vmatpush.bf16.msra.mxu0 0
        %2103 = vmatpush.bf16.msra.mxu0 0
        %2104 = vmatpush.bf16.msra.mxu0 0
        %2105 = vmatpush.bf16.msra.mxu0 %v2093
        %2106 = vmatpush.bf16.msra.mxu0 %v2092
        %2107 = vmatpush.bf16.msra.mxu0 %v2091
        %2108 = vmatpush.bf16.msra.mxu0 %v2090
        %2109 = vmatpush.bf16.msra.mxu0 %v2089
        %2110 = vmatmul.bf16.gmra.mxu0 %v2100
        %v2111 = vpop.f32.mrf.mxu0
        %v2112 = vadd.f32 %v2066, %v2111
        %v2113 = vpop.f32.mrf.mxu0
        %2114 = vdwg.mxu0
        %s2115 = scalar_lea.vmem %s9, 160
        %v2116 = vld [vmem:[%s2115] sm:$0xf]
        %v2117 = vld [vmem:[%s2115 + $0x4] sm:$0xf]
        %v2118 = vld [vmem:[%s2115 + $0x8] sm:$0xf]
        %v2119 = vld [vmem:[%s2115 + $0xc] sm:$0xf]
        %v2120 = vld [vmem:[%s2115 + $0x10] sm:$0xf]
        %v2121 = vld [vmem:[%s2115 + $0x14] sm:$0xf]
        %v2122 = vld [vmem:[%s2115 + $0x18] sm:$0xf]
        %v2123 = vld [vmem:[%s2115 + $0x1c] sm:$0xf]
        %v2124 = vld [vmem:[%s2115 + $0x20] sm:$0xf]
        %v2125 = vld [vmem:[%s2115 + $0x24] sm:$0xf]
        %v2126 = vrot.slane %v1891, 2
        %v2137 = vunpack.c.l.b16 %v2116
        %v2138 = vunpack.c.l.b16 %v2117
        %v2139 = vunpack.c.l.b16 %v2118
        %v2140 = vunpack.c.l.b16 %v2119
        %v2141 = vunpack.c.l.b16 %v2120
        %v2142 = vunpack.c.l.b16 %v2121
        %v2143 = vunpack.c.l.b16 %v2122
        %v2144 = vunpack.c.l.b16 %v2123
        %v2145 = vunpack.c.l.b16 %v2124
        %v2146 = vunpack.c.l.b16 %v2125
        %v2147 = vpack.c.b16 %v2138, %v2137
        %v2148 = vpack.c.b16 %v2140, %v2139
        %v2149 = vpack.c.b16 %v2142, %v2141
        %v2150 = vpack.c.b16 %v2144, %v2143
        %v2151 = vpack.c.b16 %v2146, %v2145
        %v2158 = vsel %vm1946, %v2126, 0
        %2160 = vmatpush.bf16.msra.mxu0 0
        %2161 = vmatpush.bf16.msra.mxu0 0
        %2162 = vmatpush.bf16.msra.mxu0 0
        %2163 = vmatpush.bf16.msra.mxu0 %v2151
        %2164 = vmatpush.bf16.msra.mxu0 %v2150
        %2165 = vmatpush.bf16.msra.mxu0 %v2149
        %2166 = vmatpush.bf16.msra.mxu0 %v2148
        %2167 = vmatpush.bf16.msra.mxu0 %v2147
        %2168 = vmatmul.bf16.gmra.mxu0 %v2158
        %v2169 = vpop.f32.mrf.mxu0
        %v2170 = vadd.f32 0.0, %v2169
        %v2171 = vpop.f32.mrf.mxu0
        %2172 = vdwg.mxu0
        %v2173 = vadd.f32 %v2006, %v2170
        %v2174 = vadd.f32 %v2173, %v2112
        %v2175 = vld [vmem:[%s10] sm:$0x1]
        %v2176 = vadd.f32 %v2174, %v2175
        %v2177 = vtanh.pop %v2176
        %v2178 = vmul.f32 %v2177, 1.7159
        %v2179 = vld [vmem:[%s11] sm:$0xf]
        %v2180 = vld [vmem:[%s11 + $0x4] sm:$0xf]
        %v2181 = vld [vmem:[%s11 + $0x8] sm:$0xf]
        %v2182 = vld [vmem:[%s11 + $0xc] sm:$0xf]
        %v2183 = vld [vmem:[%s11 + $0x10] sm:$0xf]
        %v2184 = vld [vmem:[%s11 + $0x14] sm:$0xf]
        %v2185 = vld [vmem:[%s11 + $0x18] sm:$0xf]
        %v2186 = vld [vmem:[%s11 + $0x1c] sm:$0xf]
        %v2187 = vld [vmem:[%s11 + $0x20] sm:$0xf]
        %v2188 = vld [vmem:[%s11 + $0x24] sm:$0xf]
        %v2189 = vld [vmem:[%s11 + $0x28] sm:$0xf]
        %v2190 = vld [vmem:[%s11 + $0x2c] sm:$0xf]
        %v2191 = vld [vmem:[%s11 + $0x30] sm:$0xf]
        %v2192 = vld [vmem:[%s11 + $0x34] sm:$0xf]
        %v2193 = vld [vmem:[%s11 + $0x38] sm:$0xf]
        %v2194 = vpack.c.bf16 %v2178, %v2178
        %v2195 = vld [vmem:[%s12] sm:$0x1]
        %v2211 = vunpack.c.l.b16 %v2179
        %v2212 = vunpack.c.l.b16 %v2180
        %v2213 = vunpack.c.l.b16 %v2181
        %v2214 = vunpack.c.l.b16 %v2182
        %v2215 = vunpack.c.l.b16 %v2183
        %v2216 = vunpack.c.l.b16 %v2184
        %v2217 = vunpack.c.l.b16 %v2185
        %v2218 = vunpack.c.l.b16 %v2186
        %v2219 = vunpack.c.l.b16 %v2187
        %v2220 = vunpack.c.l.b16 %v2188
        %v2221 = vunpack.c.l.b16 %v2189
        %v2222 = vunpack.c.l.b16 %v2190
        %v2223 = vunpack.c.l.b16 %v2191
        %v2224 = vunpack.c.l.b16 %v2192
        %v2225 = vunpack.c.l.b16 %v2193
        %v2226 = vpack.c.b16 %v2212, %v2211
        %v2227 = vpack.c.b16 %v2214, %v2213
        %v2228 = vpack.c.b16 %v2216, %v2215
        %v2229 = vpack.c.b16 %v2218, %v2217
        %v2230 = vpack.c.b16 %v2220, %v2219
        %v2231 = vpack.c.b16 %v2222, %v2221
        %v2232 = vpack.c.b16 %v2224, %v2223
        %v2233 = vpack.c.b16 %v2225, %v2225
        %vm2241 = vcmask 982016
        %v2243 = vsel %vm2241, %v2194, 0
        %v2246 = vsel %vm1862, %v2233, 0
        %2248 = vmatpush.bf16.msra.mxu0 %v2246
        %2249 = vmatpush.bf16.msra.mxu0 %v2232
        %2250 = vmatpush.bf16.msra.mxu0 %v2231
        %2251 = vmatpush.bf16.msra.mxu0 %v2230
        %2252 = vmatpush.bf16.msra.mxu0 %v2229
        %2253 = vmatpush.bf16.msra.mxu0 %v2228
        %2254 = vmatpush.bf16.msra.mxu0 %v2227
        %2255 = vmatpush.bf16.msra.mxu0 %v2226
        %2256 = vmatmul.bf16.gmra.mxu0 %v2243
        %v2257 = vpop.f32.mrf.mxu0
        %v2258 = vadd.f32 %v2195, %v2257
        %v2259 = vpop.f32.mrf.mxu0
        %2260 = vdwg.mxu0
        %v2261 = vtanh.pop %v2258
        %v2262 = vmul.f32 %v2261, 1.7159
        %v2263 = vld [vmem:[%s13] sm:$0xf]
        %v2264 = vld [vmem:[%s13 + $0x4] sm:$0xf]
        %v2265 = vld [vmem:[%s13 + $0x8] sm:$0xf]
        %v2266 = vld [vmem:[%s13 + $0xc] sm:$0xf]
        %v2267 = vld [vmem:[%s13 + $0x10] sm:$0xf]
        %v2268 = vld [vmem:[%s13 + $0x14] sm:$0xf]
        %v2269 = vld [vmem:[%s13 + $0x18] sm:$0xf]
        %v2270 = vld [vmem:[%s13 + $0x1c] sm:$0xf]
        %v2271 = vld [vmem:[%s13 + $0x20] sm:$0xf]
        %v2272 = vld [vmem:[%s13 + $0x24] sm:$0xf]
        %v2273 = vld [vmem:[%s13 + $0x28] sm:$0x3]
        %v2274 = vpack.c.bf16 %v2262, %v2262
        %v2275 = vld [vmem:[%s14] sm:$0x1]
        %v2287 = vunpack.c.l.b16 %v2263
        %v2288 = vunpack.c.l.b16 %v2264
        %v2289 = vunpack.c.l.b16 %v2265
        %v2290 = vunpack.c.l.b16 %v2266
        %v2291 = vunpack.c.l.b16 %v2267
        %v2292 = vunpack.c.l.b16 %v2268
        %v2293 = vunpack.c.l.b16 %v2269
        %v2294 = vunpack.c.l.b16 %v2270
        %v2295 = vunpack.c.l.b16 %v2271
        %v2296 = vunpack.c.l.b16 %v2272
        %v2297 = vunpack.c.l.b16 %v2273
        %v2298 = vpack.c.b16 %v2288, %v2287
        %v2299 = vpack.c.b16 %v2290, %v2289
        %v2300 = vpack.c.b16 %v2292, %v2291
        %v2301 = vpack.c.b16 %v2294, %v2293
        %v2302 = vpack.c.b16 %v2296, %v2295
        %v2303 = vpack.c.b16 %v2297, %v2297
        %v2310 = vsel %vm1251, %v2274, 0
        %v2313 = vsel %vm1255, %v2303, 0
        %2315 = vmatpush.bf16.msra.mxu0 0
        %2316 = vmatpush.bf16.msra.mxu0 0
        %2317 = vmatpush.bf16.msra.mxu0 %v2313
        %2318 = vmatpush.bf16.msra.mxu0 %v2302
        %2319 = vmatpush.bf16.msra.mxu0 %v2301
        %2320 = vmatpush.bf16.msra.mxu0 %v2300
        %2321 = vmatpush.bf16.msra.mxu0 %v2299
        %2322 = vmatpush.bf16.msra.mxu0 %v2298
        %2323 = vmatmul.bf16.gmra.mxu0 %v2310
        %v2324 = vpop.f32.mrf.mxu0
        %v2325 = vadd.f32 %v2275, %v2324
        %v2326 = vpop.f32.mrf.mxu0
        %2327 = vdwg.mxu0
        %vm2328 = vcmask 73728
        %2329 = vst.msk [vmem:[%s486] sm:$0x1] %vm2328, %v2325
        %s2330 = sand.u32 %s357, 1
        %s2331 = scalar_lea.sflag [#allocation3], %s2330
        %s2332 = sand.u32 %s357, 1
        %s2333 = scalar_lea.vmem [#allocation2], %s2332
        // Predicated region
        $region81: #{lenet5_forward.1} parent=79 // pred_check
          %p2334 = pneg %p367
        $region82: #{lenet5_forward.1} parent=79 // pred_check_branch
          %2336 = sbr.rel (%p2334) target = $region84
        $region83: #{lenet5_forward.1} parent=79 // pred_region
          %2338 = vsyncadd %s2331, 0
          %s2339 = scalar_lea.hbm %s15, %s29
          %s2341 = sshll.u32 %s2333, 4
          %s2342 = int_to_ptr.vmem [resolvable:$true] %s2341
          %s2343 = sshll.u32 %s2339, 4
          %s2344 = int_to_ptr.hbm [resolvable:$true] %s2343
          %2346 = dma.vmem_to_hbm [thread:$0]  %s2342, 16, %s2344, %s2331
        $region84: #{lenet5_forward.1} parent=79 // pred_fallthru
          _
      $region80: #{lenet5_forward.1} parent=5 // pred_fallthru
        _
      %p2347 = scmp.le.s32.totalorder 2, %s24
      // Predicated region
      $region85: #{lenet5_forward.1} parent=5 // pred_check
        %p2348 = pneg %p2347
      $region86: #{lenet5_forward.1} parent=5 // pred_check_branch
        %2350 = sbr.rel (%p2348) target = $region88
      $region87: #{lenet5_forward.1} parent=5 // pred_region
        %s2351 = ssub.s32 %s24, 2
        // Predicated region
        $region89: #{lenet5_forward.1} parent=87 // pred_check
          %p2352 = pneg %p373
        $region90: #{lenet5_forward.1} parent=87 // pred_check_branch
          %2354 = sbr.rel (%p2352) target = $region92
        $region91: #{lenet5_forward.1} parent=87 // pred_region
          %s2355 = sand.u32 %s358, 1
          %s2356 = scalar_lea.sflag [#allocation3], %s2355
          %s2357 = sand.u32 %s358, 1
          %s2358 = scalar_lea.vmem [#allocation2], %s2357
          %2360 = dma.done %s2356, 16
        $region92: #{lenet5_forward.1} parent=87 // pred_fallthru
          _
      $region88: #{lenet5_forward.1} parent=5 // pred_fallthru
        _
    $region6: #{lenet5_forward.1} parent=1 // loop_footer
      %s28 = sadd.s32 1, %s24
    $region7: #{lenet5_forward.1} parent=1 // loop_footer_branch
      %23 = sbr.rel target = $region3
    $region8: #{lenet5_forward.1} parent=1 // loop_exit
      _
    %2361 = vsyncpa [#allocation3], 1
    %s2362 = scalar_lea.sflag [#allocation3], 1
    %2363 = vsyncpa %s2362, 1

</llo_original>
